<compile_context>
chip_gen: v7x
topology: tpu7x:2x2x1
jax: 0.10.0
libtpu: 0.0.40
codegen_flags: <defaults>
</compile_context>

<pallas_src>
import numpy as np
import jax
import jax.numpy as jnp
from jax.experimental import pallas as pl
from jax.experimental.pallas import tpu as pltpu

_P = 256          # padded feature width (max hidden size in the chain)
_N_CHAIN = 7      # Linear+ReLU layers (embeds + linearlayers)
_N_LAYERS = 8     # chain layers + fused task-head layer


def _round_up(x, m):
    return (x + m - 1) // m * m


# ---------------------------------------------------------------------------
# Host-side parameter init (mirrors the torch module's __init__) -- NumPy only
# ---------------------------------------------------------------------------
def _orthogonal_np(rng, out_features, in_features):
    """torch.nn.init.orthogonal_ equivalent for a (out, in) weight matrix."""
    rows, cols = out_features, in_features
    a = rng.standard_normal((max(rows, cols), min(rows, cols))).astype(np.float64)
    q, r = np.linalg.qr(a)
    q = q * np.sign(np.diag(r))[None, :]
    if rows < cols:
        q = q.T
    return q[:rows, :cols].astype(np.float32)


def _kaiming_uniform_linear_np(rng, out_features, in_features):
    """Default nn.Linear init: kaiming_uniform(a=sqrt(5)) -> bound = 1/sqrt(fan_in)."""
    bound = 1.0 / np.sqrt(in_features)
    w = rng.uniform(-bound, bound, (out_features, in_features)).astype(np.float32)
    b = rng.uniform(-bound, bound, (out_features,)).astype(np.float32)
    return w, b


def init_params(seed, config):
    rng = np.random.default_rng(seed)
    dims_chain = [
        (config["input_size"], config["emb_size"], "default"),   # nn.Linear
        (config["emb_size"], config["hidden_size"], "ortho"),    # OrthoLinear
        (config["hidden_size"], 256, "ortho"),
        (256, 128, "ortho"),
        (128, 64, "ortho"),
        (64, 32, "ortho"),
        (32, 32, "ortho"),
    ]
    params = {"chain": [], "tasks": []}
    for din, dout, kind in dims_chain:
        if kind == "ortho":
            w = _orthogonal_np(rng, dout, din)
            b = np.zeros((dout,), np.float32)
        else:
            w, b = _kaiming_uniform_linear_np(rng, dout, din)
        params["chain"].append((w, b))
    for _ in range(4):
        w = _orthogonal_np(rng, 1, 32)          # OrthoLinear(32, 1)
        b = np.zeros((1,), np.float32)
        params["tasks"].append((w, b))
    return params


def pack_params(params, config):
    """ONE-TIME packing: pre-transposed [in, out] weights, zero-padded to a
    common 256-lane width, stacked into dense buffers (bf16 weights / f32 bias)."""
    in_size = config["input_size"]
    chain = params["chain"]

    w0 = np.zeros((in_size, _P), np.float32)
    w0[:, : chain[0][0].shape[0]] = chain[0][0].T

    wrest = np.zeros((_N_LAYERS - 1, _P, _P), np.float32)
    biases = np.zeros((_N_LAYERS, 1, _P), np.float32)
    biases[0, 0, : chain[0][1].shape[0]] = chain[0][1]

    for i in range(1, _N_CHAIN):
        w, b = chain[i]
        dout, din = w.shape
        wrest[i - 1, :din, :dout] = w.T
        biases[i, 0, :dout] = b

    # Last packed layer = all 4 task heads, one per output column (0..3).
    for t, (wt, bt) in enumerate(params["tasks"]):
        wrest[_N_CHAIN - 1, : wt.shape[1], t] = wt[0]
        biases[_N_CHAIN, 0, t] = bt[0]

    return {"w0": jnp.asarray(w0, jnp.bfloat16),
            "wrest": jnp.asarray(wrest, jnp.bfloat16),
            "b": jnp.asarray(biases, jnp.float32)}


# ---------------------------------------------------------------------------
# Pallas kernel: whole MLP forward for one batch block
# ---------------------------------------------------------------------------
def _mlp_kernel(x_ref, w0_ref, wrest_ref, b_ref, out_ref):
    # Layer 0: (bb, in) @ (in, 256) -- bf16 MXU, f32 accumulate.
    h = jnp.dot(x_ref[...].astype(jnp.bfloat16), w0_ref[...],
                preferred_element_type=jnp.float32)
    h = jnp.maximum(h + b_ref[0], 0.0)                       # f32 bias + ReLU
    # Chain layers 1..6, all zero-padded to 256x256 (padded cols stay 0 post-ReLU).
    for i in range(_N_CHAIN - 1):
        h = jnp.dot(h.astype(jnp.bfloat16), wrest_ref[i],
                    preferred_element_type=jnp.float32)
        h = jnp.maximum(h + b_ref[i + 1], 0.0)
    # Fused task-head layer: all 4 heads at once (columns 0..3), no ReLU.
    logits = jnp.dot(h.astype(jnp.bfloat16), wrest_ref[_N_CHAIN - 1],
                     preferred_element_type=jnp.float32) + b_ref[_N_CHAIN]
    # Lane-dense store of the first 128 columns; wrapper picks the task column.
    out_ref[...] = jax.nn.sigmoid(logits[:, :128])


@jax.jit
def _forward_packed(x, packed, task_id):
    batch, in_size = x.shape
    bb = 256 if batch >= 256 else _round_up(batch, 8)
    padded = _round_up(batch, bb)
    if padded != batch:
        x = jnp.pad(x, ((0, padded - batch), (0, 0)))
    grid = (padded // bb,)

    out128 = pl.pallas_call(
        _mlp_kernel,
        out_shape=jax.ShapeDtypeStruct((padded, 128), jnp.float32),
        grid=grid,
        in_specs=[
            pl.BlockSpec((bb, in_size), lambda i: (i, 0)),                 # x block
            pl.BlockSpec((in_size, _P), lambda i: (0, 0)),                 # w0 (resident)
            pl.BlockSpec((_N_LAYERS - 1, _P, _P), lambda i: (0, 0, 0)),    # wrest (resident)
            pl.BlockSpec((_N_LAYERS, 1, _P), lambda i: (0, 0, 0)),         # biases (resident)
        ],
        out_specs=pl.BlockSpec((bb, 128), lambda i: (i, 0)),
        compiler_params=pltpu.CompilerParams(
            dimension_semantics=("parallel",)),
    )(x, packed["w0"], packed["wrest"], packed["b"])

    col = jax.lax.dynamic_slice_in_dim(out128, task_id, 1, axis=1)
    return col[:batch]


def nn_model_forward(x, packed, task_id: int):
    """Equivalent of NNModel.forward(x, task_id). x: [batch, input_size]."""
    if task_id not in (0, 1, 2, 3):
        raise AssertionError("Bad Task ID passed")
    # task_id is a runtime scalar -> one compiled kernel serves all 4 tasks.
    return _forward_packed(x, packed, jnp.int32(task_id))


# ---------------------------------------------------------------------------
# Pure-JAX reference (same bf16-weight / f32-accumulate math) for verification
# ---------------------------------------------------------------------------
def reference_forward(x, params, task_id):
    h = x
    for (w, b) in params["chain"]:
        y = jnp.dot(h.astype(jnp.bfloat16), jnp.asarray(w.T, jnp.bfloat16),
                    preferred_element_type=jnp.float32) + jnp.asarray(b)
        h = jnp.maximum(y, 0.0)
    wt, bt = params["tasks"][task_id]
    logit = jnp.dot(h.astype(jnp.bfloat16), jnp.asarray(wt.T, jnp.bfloat16),
                    preferred_element_type=jnp.float32) + jnp.asarray(bt)
    return jax.nn.sigmoid(logit)


if __name__ == "__main__":
    config = {"input_size": 32, "emb_size": 64, "hidden_size": 64}
    batch = 8

    params = init_params(0, config)          # host-side NumPy init
    packed = pack_params(params, config)     # one-time packing (not per call)

    x = jax.random.normal(jax.random.PRNGKey(0), (batch, config["input_size"]),
                          jnp.float32)

    task_id = 2
    out = jax.block_until_ready(nn_model_forward(x, packed, task_id))
    ref = reference_forward(x, params, task_id)
    assert out.shape == (batch, 1), out.shape
    assert jnp.allclose(out, ref, atol=1e-3, rtol=1e-3), (out, ref)

    # All task ids reuse the SAME compiled kernel (task_id is a runtime scalar).
    for t in (0, 1, 3):
        o_t = jax.block_until_ready(nn_model_forward(x, packed, t))
        r_t = reference_forward(x, params, t)
        assert jnp.allclose(o_t, r_t, atol=1e-3, rtol=1e-3), t

    print("KERNEL_OK")
</pallas_src>

<mosaic_0001>
module attributes {stable_mosaic.version = 11 : i64} {
  func.func @_mlp_kernel(%arg0: i32, %arg1: memref<8x32xf32, #tpu.memory_space<vmem>>, %arg2: memref<32x256xbf16, #tpu.memory_space<vmem>>, %arg3: memref<7x256x256xbf16, #tpu.memory_space<vmem>>, %arg4: memref<8x1x256xf32, #tpu.memory_space<vmem>>, %arg5: memref<8x128xf32, #tpu.memory_space<vmem>>) attributes {dimension_semantics = [#tpu.dimension_semantics<parallel>], iteration_bounds = array<i64: 1>, scalar_prefetch = 0 : i64, scratch_operands = 0 : i64, tpu.core_type = #tpu.core_type<tc>, window_params = [{transform_indices = @transform_0, window_bounds = array<i64: 8, 32>}, {pipeline_mode = #tpu.pipeline_mode<synchronous>, transform_indices = @transform_1, window_bounds = array<i64: 32, 256>}, {pipeline_mode = #tpu.pipeline_mode<synchronous>, transform_indices = @transform_2, window_bounds = array<i64: 7, 256, 256>}, {pipeline_mode = #tpu.pipeline_mode<synchronous>, transform_indices = @transform_3, window_bounds = array<i64: 8, 1, 256>}, {transform_indices = @transform_4, window_bounds = array<i64: 8, 128>}]} {
    %c0 = arith.constant 0 : index
    %c0_0 = arith.constant 0 : index
    %0 = vector.load %arg1[%c0, %c0_0] : memref<8x32xf32, #tpu.memory_space<vmem>>, vector<8x32xf32>
    %1 = arith.truncf %0 : vector<8x32xf32> to vector<8x32xbf16>
    %c0_1 = arith.constant 0 : index
    %c0_2 = arith.constant 0 : index
    %2 = vector.load %arg2[%c0_1, %c0_2] : memref<32x256xbf16, #tpu.memory_space<vmem>>, vector<32x256xbf16>
    %cst = arith.constant dense<0.000000e+00> : vector<8x256xf32>
    %3 = tpu.matmul %1, %2, %cst {dimension_numbers = #tpu.dot_dimension_numbers<[1], [0], [0], [1], [0, 0, 1, 1], [], []>} : vector<8x32xbf16>, vector<32x256xbf16>, vector<8x256xf32> -> vector<8x256xf32>
    %c0_3 = arith.constant 0 : index
    %c0_4 = arith.constant 0 : index
    %c0_5 = arith.constant 0 : index
    %4 = vector.load %arg4[%c0_3, %c0_4, %c0_5] : memref<8x1x256xf32, #tpu.memory_space<vmem>>, vector<1x1x256xf32>
    %5 = vector.shape_cast %4 : vector<1x1x256xf32> to vector<1x256xf32>
    %6 = vector.broadcast %5 : vector<1x256xf32> to vector<8x256xf32>
    %7 = arith.addf %3, %6 : vector<8x256xf32>
    %cst_6 = arith.constant 0.000000e+00 : f32
    %8 = vector.broadcast %cst_6 : f32 to vector<8x256xf32>
    %9 = arith.maximumf %7, %8 : vector<8x256xf32>
    %10 = arith.truncf %9 : vector<8x256xf32> to vector<8x256xbf16>
    %c0_7 = arith.constant 0 : index
    %c0_8 = arith.constant 0 : index
    %c0_9 = arith.constant 0 : index
    %11 = vector.load %arg3[%c0_7, %c0_8, %c0_9] : memref<7x256x256xbf16, #tpu.memory_space<vmem>>, vector<1x256x256xbf16>
    %12 = vector.shape_cast %11 : vector<1x256x256xbf16> to vector<256x256xbf16>
    %cst_10 = arith.constant dense<0.000000e+00> : vector<8x256xf32>
    %13 = tpu.matmul %10, %12, %cst_10 {dimension_numbers = #tpu.dot_dimension_numbers<[1], [0], [0], [1], [0, 0, 1, 1], [], []>} : vector<8x256xbf16>, vector<256x256xbf16>, vector<8x256xf32> -> vector<8x256xf32>
    %c1 = arith.constant 1 : index
    %c0_11 = arith.constant 0 : index
    %c0_12 = arith.constant 0 : index
    %14 = vector.load %arg4[%c1, %c0_11, %c0_12] : memref<8x1x256xf32, #tpu.memory_space<vmem>>, vector<1x1x256xf32>
    %15 = vector.shape_cast %14 : vector<1x1x256xf32> to vector<1x256xf32>
    %16 = vector.broadcast %15 : vector<1x256xf32> to vector<8x256xf32>
    %17 = arith.addf %13, %16 : vector<8x256xf32>
    %cst_13 = arith.constant 0.000000e+00 : f32
    %18 = vector.broadcast %cst_13 : f32 to vector<8x256xf32>
    %19 = arith.maximumf %17, %18 : vector<8x256xf32>
    %20 = arith.truncf %19 : vector<8x256xf32> to vector<8x256xbf16>
    %c1_14 = arith.constant 1 : index
    %c0_15 = arith.constant 0 : index
    %c0_16 = arith.constant 0 : index
    %21 = vector.load %arg3[%c1_14, %c0_15, %c0_16] : memref<7x256x256xbf16, #tpu.memory_space<vmem>>, vector<1x256x256xbf16>
    %22 = vector.shape_cast %21 : vector<1x256x256xbf16> to vector<256x256xbf16>
    %cst_17 = arith.constant dense<0.000000e+00> : vector<8x256xf32>
    %23 = tpu.matmul %20, %22, %cst_17 {dimension_numbers = #tpu.dot_dimension_numbers<[1], [0], [0], [1], [0, 0, 1, 1], [], []>} : vector<8x256xbf16>, vector<256x256xbf16>, vector<8x256xf32> -> vector<8x256xf32>
    %c2 = arith.constant 2 : index
    %c0_18 = arith.constant 0 : index
    %c0_19 = arith.constant 0 : index
    %24 = vector.load %arg4[%c2, %c0_18, %c0_19] : memref<8x1x256xf32, #tpu.memory_space<vmem>>, vector<1x1x256xf32>
    %25 = vector.shape_cast %24 : vector<1x1x256xf32> to vector<1x256xf32>
    %26 = vector.broadcast %25 : vector<1x256xf32> to vector<8x256xf32>
    %27 = arith.addf %23, %26 : vector<8x256xf32>
    %cst_20 = arith.constant 0.000000e+00 : f32
    %28 = vector.broadcast %cst_20 : f32 to vector<8x256xf32>
    %29 = arith.maximumf %27, %28 : vector<8x256xf32>
    %30 = arith.truncf %29 : vector<8x256xf32> to vector<8x256xbf16>
    %c2_21 = arith.constant 2 : index
    %c0_22 = arith.constant 0 : index
    %c0_23 = arith.constant 0 : index
    %31 = vector.load %arg3[%c2_21, %c0_22, %c0_23] : memref<7x256x256xbf16, #tpu.memory_space<vmem>>, vector<1x256x256xbf16>
    %32 = vector.shape_cast %31 : vector<1x256x256xbf16> to vector<256x256xbf16>
    %cst_24 = arith.constant dense<0.000000e+00> : vector<8x256xf32>
    %33 = tpu.matmul %30, %32, %cst_24 {dimension_numbers = #tpu.dot_dimension_numbers<[1], [0], [0], [1], [0, 0, 1, 1], [], []>} : vector<8x256xbf16>, vector<256x256xbf16>, vector<8x256xf32> -> vector<8x256xf32>
    %c3 = arith.constant 3 : index
    %c0_25 = arith.constant 0 : index
    %c0_26 = arith.constant 0 : index
    %34 = vector.load %arg4[%c3, %c0_25, %c0_26] : memref<8x1x256xf32, #tpu.memory_space<vmem>>, vector<1x1x256xf32>
    %35 = vector.shape_cast %34 : vector<1x1x256xf32> to vector<1x256xf32>
    %36 = vector.broadcast %35 : vector<1x256xf32> to vector<8x256xf32>
    %37 = arith.addf %33, %36 : vector<8x256xf32>
    %cst_27 = arith.constant 0.000000e+00 : f32
    %38 = vector.broadcast %cst_27 : f32 to vector<8x256xf32>
    %39 = arith.maximumf %37, %38 : vector<8x256xf32>
    %40 = arith.truncf %39 : vector<8x256xf32> to vector<8x256xbf16>
    %c3_28 = arith.constant 3 : index
    %c0_29 = arith.constant 0 : index
    %c0_30 = arith.constant 0 : index
    %41 = vector.load %arg3[%c3_28, %c0_29, %c0_30] : memref<7x256x256xbf16, #tpu.memory_space<vmem>>, vector<1x256x256xbf16>
    %42 = vector.shape_cast %41 : vector<1x256x256xbf16> to vector<256x256xbf16>
    %cst_31 = arith.constant dense<0.000000e+00> : vector<8x256xf32>
    %43 = tpu.matmul %40, %42, %cst_31 {dimension_numbers = #tpu.dot_dimension_numbers<[1], [0], [0], [1], [0, 0, 1, 1], [], []>} : vector<8x256xbf16>, vector<256x256xbf16>, vector<8x256xf32> -> vector<8x256xf32>
    %c4 = arith.constant 4 : index
    %c0_32 = arith.constant 0 : index
    %c0_33 = arith.constant 0 : index
    %44 = vector.load %arg4[%c4, %c0_32, %c0_33] : memref<8x1x256xf32, #tpu.memory_space<vmem>>, vector<1x1x256xf32>
    %45 = vector.shape_cast %44 : vector<1x1x256xf32> to vector<1x256xf32>
    %46 = vector.broadcast %45 : vector<1x256xf32> to vector<8x256xf32>
    %47 = arith.addf %43, %46 : vector<8x256xf32>
    %cst_34 = arith.constant 0.000000e+00 : f32
    %48 = vector.broadcast %cst_34 : f32 to vector<8x256xf32>
    %49 = arith.maximumf %47, %48 : vector<8x256xf32>
    %50 = arith.truncf %49 : vector<8x256xf32> to vector<8x256xbf16>
    %c4_35 = arith.constant 4 : index
    %c0_36 = arith.constant 0 : index
    %c0_37 = arith.constant 0 : index
    %51 = vector.load %arg3[%c4_35, %c0_36, %c0_37] : memref<7x256x256xbf16, #tpu.memory_space<vmem>>, vector<1x256x256xbf16>
    %52 = vector.shape_cast %51 : vector<1x256x256xbf16> to vector<256x256xbf16>
    %cst_38 = arith.constant dense<0.000000e+00> : vector<8x256xf32>
    %53 = tpu.matmul %50, %52, %cst_38 {dimension_numbers = #tpu.dot_dimension_numbers<[1], [0], [0], [1], [0, 0, 1, 1], [], []>} : vector<8x256xbf16>, vector<256x256xbf16>, vector<8x256xf32> -> vector<8x256xf32>
    %c5 = arith.constant 5 : index
    %c0_39 = arith.constant 0 : index
    %c0_40 = arith.constant 0 : index
    %54 = vector.load %arg4[%c5, %c0_39, %c0_40] : memref<8x1x256xf32, #tpu.memory_space<vmem>>, vector<1x1x256xf32>
    %55 = vector.shape_cast %54 : vector<1x1x256xf32> to vector<1x256xf32>
    %56 = vector.broadcast %55 : vector<1x256xf32> to vector<8x256xf32>
    %57 = arith.addf %53, %56 : vector<8x256xf32>
    %cst_41 = arith.constant 0.000000e+00 : f32
    %58 = vector.broadcast %cst_41 : f32 to vector<8x256xf32>
    %59 = arith.maximumf %57, %58 : vector<8x256xf32>
    %60 = arith.truncf %59 : vector<8x256xf32> to vector<8x256xbf16>
    %c5_42 = arith.constant 5 : index
    %c0_43 = arith.constant 0 : index
    %c0_44 = arith.constant 0 : index
    %61 = vector.load %arg3[%c5_42, %c0_43, %c0_44] : memref<7x256x256xbf16, #tpu.memory_space<vmem>>, vector<1x256x256xbf16>
    %62 = vector.shape_cast %61 : vector<1x256x256xbf16> to vector<256x256xbf16>
    %cst_45 = arith.constant dense<0.000000e+00> : vector<8x256xf32>
    %63 = tpu.matmul %60, %62, %cst_45 {dimension_numbers = #tpu.dot_dimension_numbers<[1], [0], [0], [1], [0, 0, 1, 1], [], []>} : vector<8x256xbf16>, vector<256x256xbf16>, vector<8x256xf32> -> vector<8x256xf32>
    %c6 = arith.constant 6 : index
    %c0_46 = arith.constant 0 : index
    %c0_47 = arith.constant 0 : index
    %64 = vector.load %arg4[%c6, %c0_46, %c0_47] : memref<8x1x256xf32, #tpu.memory_space<vmem>>, vector<1x1x256xf32>
    %65 = vector.shape_cast %64 : vector<1x1x256xf32> to vector<1x256xf32>
    %66 = vector.broadcast %65 : vector<1x256xf32> to vector<8x256xf32>
    %67 = arith.addf %63, %66 : vector<8x256xf32>
    %cst_48 = arith.constant 0.000000e+00 : f32
    %68 = vector.broadcast %cst_48 : f32 to vector<8x256xf32>
    %69 = arith.maximumf %67, %68 : vector<8x256xf32>
    %70 = arith.truncf %69 : vector<8x256xf32> to vector<8x256xbf16>
    %c6_49 = arith.constant 6 : index
    %c0_50 = arith.constant 0 : index
    %c0_51 = arith.constant 0 : index
    %71 = vector.load %arg3[%c6_49, %c0_50, %c0_51] : memref<7x256x256xbf16, #tpu.memory_space<vmem>>, vector<1x256x256xbf16>
    %72 = vector.shape_cast %71 : vector<1x256x256xbf16> to vector<256x256xbf16>
    %cst_52 = arith.constant dense<0.000000e+00> : vector<8x256xf32>
    %73 = tpu.matmul %70, %72, %cst_52 {dimension_numbers = #tpu.dot_dimension_numbers<[1], [0], [0], [1], [0, 0, 1, 1], [], []>} : vector<8x256xbf16>, vector<256x256xbf16>, vector<8x256xf32> -> vector<8x256xf32>
    %c7 = arith.constant 7 : index
    %c0_53 = arith.constant 0 : index
    %c0_54 = arith.constant 0 : index
    %74 = vector.load %arg4[%c7, %c0_53, %c0_54] : memref<8x1x256xf32, #tpu.memory_space<vmem>>, vector<1x1x256xf32>
    %75 = vector.shape_cast %74 : vector<1x1x256xf32> to vector<1x256xf32>
    %76 = vector.broadcast %75 : vector<1x256xf32> to vector<8x256xf32>
    %77 = arith.addf %73, %76 : vector<8x256xf32>
    %78 = vector.extract_strided_slice %77 {offsets = [0, 0], sizes = [8, 128], strides = [1, 1]} : vector<8x256xf32> to vector<8x128xf32>
    %79 = arith.negf %78 : vector<8x128xf32>
    %80 = math.exp %79 : vector<8x128xf32>
    %cst_55 = arith.constant 1.000000e+00 : f32
    %81 = vector.broadcast %cst_55 : f32 to vector<8x128xf32>
    %82 = arith.addf %81, %80 : vector<8x128xf32>
    %83 = arith.divf %81, %82 : vector<8x128xf32>
    %c0_56 = arith.constant 0 : index
    %c0_57 = arith.constant 0 : index
    %84 = vector.load %arg5[%c0_56, %c0_57] : memref<8x128xf32, #tpu.memory_space<vmem>>, vector<8x128xf32>
    tpu.vector_store %arg5[%c0_56, %c0_57], %83 {strides = array<i32>} : memref<8x128xf32, #tpu.memory_space<vmem>>, vector<8x128xf32>,
    return
  }
  func.func @transform_0(%arg0: i32) -> (i32, i32) {
    %c0_i32 = arith.constant 0 : i32
    %c0_i32_0 = arith.constant 0 : i32
    return %arg0, %c0_i32 : i32, i32
  }
  func.func @transform_1(%arg0: i32) -> (i32, i32) {
    %c0_i32 = arith.constant 0 : i32
    %c0_i32_0 = arith.constant 0 : i32
    %c0_i32_1 = arith.constant 0 : i32
    return %c0_i32, %c0_i32_0 : i32, i32
  }
  func.func @transform_2(%arg0: i32) -> (i32, i32, i32) {
    %c0_i32 = arith.constant 0 : i32
    %c0_i32_0 = arith.constant 0 : i32
    %c0_i32_1 = arith.constant 0 : i32
    %c0_i32_2 = arith.constant 0 : i32
    return %c0_i32, %c0_i32_0, %c0_i32_1 : i32, i32, i32
  }
  func.func @transform_3(%arg0: i32) -> (i32, i32, i32) {
    %c0_i32 = arith.constant 0 : i32
    %c0_i32_0 = arith.constant 0 : i32
    %c0_i32_1 = arith.constant 0 : i32
    %c0_i32_2 = arith.constant 0 : i32
    return %c0_i32, %c0_i32_0, %c0_i32_1 : i32, i32, i32
  }
  func.func @transform_4(%arg0: i32) -> (i32, i32) {
    %c0_i32 = arith.constant 0 : i32
    %c0_i32_0 = arith.constant 0 : i32
    return %arg0, %c0_i32 : i32, i32
  }
}

</mosaic_0001>

<llo_original>
// kernel: _forward_packed.1
$region0: #{_forward_packed.1}
  #allocation0 [shape = 'u32[]', space=smem, size = 0x4, offset = 0x4, fixed_abs, tag = 'smem constant byte address 0x4 - core index']
  #allocation1 [shape = 'u32[144,128]{1,0:T(1,128)}', space=vmem, size = 0x12000, scoped, tag = 'internal scratch']
  %s0 = inlined_call_operand.hbm [shape: f32[8,32], index: 0, kind: input, shape index: {}]
  %s1 = inlined_call_operand.hbm [shape: bf16[32,256], index: 1, kind: input, shape index: {}]
  %s2 = inlined_call_operand.hbm [shape: bf16[7,256,256], index: 2, kind: input, shape index: {}]
  %s3 = inlined_call_operand.vmem [shape: f32[8,1,256], index: 3, kind: input, shape index: {}]
  %s4 = inlined_call_operand.vmem [shape: f32[8,128], index: 4, kind: output, shape index: {}]
  %s5 = sld [smem:[#allocation0]]
  $region38: #{_forward_packed.1} parent=0
    _
  %s7 = ssub.s32 1, %s5
  %s8 = scalar_select 0, %s7, %s5
  $region1: #{_forward_packed.1} parent=0
    #allocation2 [shape = 'u8[4096]{0}', space=vmem, size = 0x1000, scoped, tag = 'input window, operand 0, single buffered']
    #allocation3 [shape = 's32[1]{0}', space=sflag, size = 0x4, scoped, tag = 'scoped memory for _forward_packed.1']
    #allocation4 [shape = 'u8[16384]{0}', space=vmem, size = 0x4000, scoped, tag = 'input window, operand 1, single buffered']
    #allocation5 [shape = 's32[1]{0}', space=sflag, size = 0x4, scoped, tag = 'scoped memory for _forward_packed.1']
    #allocation6 [shape = 'u8[917504]{0}', space=vmem, size = 0xe0000, scoped, tag = 'input window, operand 2, single buffered']
    %9 = vsyncpa [#allocation3], 0
    %10 = vsyncpa [#allocation5], 0
    // Predicated region
    $region2: #{_forward_packed.1} parent=1 // pred_check
      _
    $region3: #{_forward_packed.1} parent=1 // pred_check_branch
      %12 = sbr.rel (0) target = $region5
    $region4: #{_forward_packed.1} parent=1 // pred_region
      %s14 = ssub.s32 128, 128
      %15 = vsyncadd [#allocation3], %s14
      %s17 = sshll.u32 [#allocation2], 4
      %s18 = int_to_ptr.vmem [resolvable:$true] %s17
      %20 = dma.hbm_to_vmem [thread:$0]  %s0, 128, %s18, [#allocation3]
    $region5: #{_forward_packed.1} parent=1 // pred_fallthru
      _
    // Predicated region
    $region6: #{_forward_packed.1} parent=1 // pred_check
      _
    $region7: #{_forward_packed.1} parent=1 // pred_check_branch
      %22 = sbr.rel (0) target = $region9
    $region8: #{_forward_packed.1} parent=1 // pred_region
      %s24 = ssub.s32 512, 512
      %25 = vsyncadd [#allocation5], %s24
      %s26 = sshll.u32 [#allocation4], 4
      %s27 = int_to_ptr.vmem [resolvable:$true] %s26
      %32 = dma.hbm_to_vmem [thread:$0]  %s1, 512, %s27, [#allocation5], 128, 128, 8
    $region9: #{_forward_packed.1} parent=1 // pred_fallthru
      _
    // Predicated region
    $region10: #{_forward_packed.1} parent=1 // pred_check
      _
    $region11: #{_forward_packed.1} parent=1 // pred_check_branch
      %34 = sbr.rel (0) target = $region13
    $region12: #{_forward_packed.1} parent=1 // pred_region
      %s36 = ssub.s32 28672, 28672
      %37 = vsyncadd [#allocation5], %s36
      %s38 = sshll.u32 [#allocation6], 4
      %s39 = int_to_ptr.vmem [resolvable:$true] %s38
      %44 = dma.hbm_to_vmem [thread:$0]  %s2, 28672, %s39, [#allocation5], 128, 128, 8
    $region13: #{_forward_packed.1} parent=1 // pred_fallthru
      _
    // Predicated region
    $region14: #{_forward_packed.1} parent=1 // pred_check
      _
    $region15: #{_forward_packed.1} parent=1 // pred_check_branch
      %46 = sbr.rel (0) target = $region17
    $region16: #{_forward_packed.1} parent=1 // pred_region
      _
    $region17: #{_forward_packed.1} parent=1 // pred_fallthru
      _
    // Predicated region
    $region18: #{_forward_packed.1} parent=1 // pred_check
      _
    $region19: #{_forward_packed.1} parent=1 // pred_check_branch
      %48 = sbr.rel (0) target = $region21
    $region20: #{_forward_packed.1} parent=1 // pred_region
      %49 = dma.done [#allocation3], 128
    $region21: #{_forward_packed.1} parent=1 // pred_fallthru
      _
    // Predicated region
    $region22: #{_forward_packed.1} parent=1 // pred_check
      _
    $region23: #{_forward_packed.1} parent=1 // pred_check_branch
      %51 = sbr.rel (0) target = $region25
    $region24: #{_forward_packed.1} parent=1 // pred_region
      %52 = dma.done [#allocation5], 512
    $region25: #{_forward_packed.1} parent=1 // pred_fallthru
      _
    // Predicated region
    $region26: #{_forward_packed.1} parent=1 // pred_check
      _
    $region27: #{_forward_packed.1} parent=1 // pred_check_branch
      %54 = sbr.rel (0) target = $region29
    $region28: #{_forward_packed.1} parent=1 // pred_region
      %55 = dma.done [#allocation5], 28672
    $region29: #{_forward_packed.1} parent=1 // pred_fallthru
      _
    %v57 = vld [vmem:[#allocation2] sm:$0xff]
    %v58 = vpack.c.bf16 %v57, %v57
    %v59 = vld [vmem:[#allocation4] sm:$0xff]
    %v60 = vld [vmem:[#allocation4 + $0x8] sm:$0xff]
    %v61 = vld [vmem:[#allocation4 + $0x10] sm:$0xff]
    %v62 = vld [vmem:[#allocation4 + $0x18] sm:$0xff]
    %v63 = vld [vmem:[%s3] sm:$0x3]
    %v65 = vlaneseq
    %v66 = vshrl.u32 %v65, 7
    %v67 = vsub.s32 0, %v66
    %v68 = vrot.slane %v63, %v67
    %v69 = vlaneseq
    %v70 = vshrl.u32 %v69, 7
    %v71 = vsub.s32 1, %v70
    %v72 = vrot.slane %v63, %v71
    %v79 = vunpack.c.l.b16 %v59
    %v80 = vunpack.c.h.b16 %v59
    %v81 = vunpack.c.l.b16 %v60
    %v82 = vunpack.c.h.b16 %v60
    %v83 = vunpack.c.l.b16 %v61
    %v84 = vunpack.c.h.b16 %v61
    %v85 = vunpack.c.l.b16 %v62
    %v86 = vunpack.c.h.b16 %v62
    %v87 = vpack.c.b16 %v81, %v79
    %v88 = vpack.c.b16 %v82, %v80
    %v89 = vpack.c.b16 %v85, %v83
    %v90 = vpack.c.b16 %v86, %v84
    %vm95 = vcmask 261120
    %v97 = vsel %vm95, %v58, 0
    %99 = vmatprep.subr.bf16.mxu0 %v88
    %100 = vmatpush1.bf16.msra.mxu0 %v87
    %101 = vmatprep.subr.bf16.mxu0 %v90
    %102 = vmatpush1.bf16.msra.mxu0 %v89
    %103 = vmatprep.subr.bf16.mxu0 0
    %104 = vmatpush1.bf16.msra.mxu0 0
    %105 = vmatprep.subr.bf16.mxu0 0
    %106 = vmatpush1.bf16.msra.mxu0 0
    %107 = vmatprep.subr.bf16.mxu0 0
    %108 = vmatpush1.bf16.msra.mxu0 0
    %109 = vmatprep.subr.bf16.mxu0 0
    %110 = vmatpush1.bf16.msra.mxu0 0
    %111 = vmatprep.subr.bf16.mxu0 0
    %112 = vmatpush1.bf16.msra.mxu0 0
    %113 = vmatprep.subr.bf16.mxu0 0
    %114 = vmatpush1.bf16.msra.mxu0 0
    %115 = vmatprep.subr.bf16.mxu0 0
    %116 = vmatpush1.bf16.msra.mxu0 0
    %117 = vmatprep.subr.bf16.mxu0 0
    %118 = vmatpush1.bf16.msra.mxu0 0
    %119 = vmatprep.subr.bf16.mxu0 0
    %120 = vmatpush1.bf16.msra.mxu0 0
    %121 = vmatprep.subr.bf16.mxu0 0
    %122 = vmatpush1.bf16.msra.mxu0 0
    %123 = vmatprep.subr.bf16.mxu0 0
    %124 = vmatpush1.bf16.msra.mxu0 0
    %125 = vmatprep.subr.bf16.mxu0 0
    %126 = vmatpush1.bf16.msra.mxu0 0
    %127 = vmatprep.subr.bf16.mxu0 0
    %128 = vmatpush1.bf16.msra.mxu0 0
    %129 = vmatprep.subr.bf16.mxu0 0
    %130 = vmatpush1.bf16.msra.mxu0 0
    %131 = vmatprep.mubr.bf16.mxu0 0
    %132 = vmatmul.mubr.bf16.gmra.mrb[0].mxu0 %v97
    %v133 = vpop.f32.mrb[0].mxu0
    %v134 = vadd.f32 %v68, %v133
    %v135 = vpop.f32.mrb[0].mxu0
    %v136 = vadd.f32 %v72, %v135
    %v137 = vpop.f32.mrb[0].mxu0
    %v138 = vpop.f32.mrb[0].mxu0
    %139 = vdwg.mxu0
    %v140 = vmax.f32 %v134, 0.0
    %v141 = vmax.f32 %v136, 0.0
    %v142 = vpack.c.bf16 %v140, %v140
    %v143 = vpack.c.bf16 %v141, %v141
    %v144 = vld [vmem:[#allocation6] sm:$0xff]
    %v145 = vld [vmem:[#allocation6 + $0x8] sm:$0xff]
    %v146 = vld [vmem:[#allocation6 + $0x10] sm:$0xff]
    %v147 = vld [vmem:[#allocation6 + $0x18] sm:$0xff]
    %v148 = vld [vmem:[#allocation6 + $0x20] sm:$0xff]
    %v149 = vld [vmem:[#allocation6 + $0x28] sm:$0xff]
    %v150 = vld [vmem:[#allocation6 + $0x30] sm:$0xff]
    %v151 = vld [vmem:[#allocation6 + $0x38] sm:$0xff]
    %v152 = vld [vmem:[#allocation6 + $0x40] sm:$0xff]
    %v153 = vld [vmem:[#allocation6 + $0x48] sm:$0xff]
    %v154 = vld [vmem:[#allocation6 + $0x50] sm:$0xff]
    %v155 = vld [vmem:[#allocation6 + $0x58] sm:$0xff]
    %v156 = vld [vmem:[#allocation6 + $0x60] sm:$0xff]
    %v157 = vld [vmem:[#allocation6 + $0x68] sm:$0xff]
    %v158 = vld [vmem:[#allocation6 + $0x70] sm:$0xff]
    %v159 = vld [vmem:[#allocation6 + $0x78] sm:$0xff]
    %v160 = vld [vmem:[#allocation6 + $0x80] sm:$0xff]
    %v161 = vld [vmem:[#allocation6 + $0x88] sm:$0xff]
    %v162 = vld [vmem:[#allocation6 + $0x90] sm:$0xff]
    %v163 = vld [vmem:[#allocation6 + $0x98] sm:$0xff]
    %v164 = vld [vmem:[#allocation6 + $0xa0] sm:$0xff]
    %v165 = vld [vmem:[#allocation6 + $0xa8] sm:$0xff]
    %v166 = vld [vmem:[#allocation6 + $0xb0] sm:$0xff]
    %v167 = vld [vmem:[#allocation6 + $0xb8] sm:$0xff]
    %v168 = vld [vmem:[#allocation6 + $0xc0] sm:$0xff]
    %v169 = vld [vmem:[#allocation6 + $0xc8] sm:$0xff]
    %v170 = vld [vmem:[#allocation6 + $0xd0] sm:$0xff]
    %v171 = vld [vmem:[#allocation6 + $0xd8] sm:$0xff]
    %v172 = vld [vmem:[#allocation6 + $0xe0] sm:$0xff]
    %v173 = vld [vmem:[#allocation6 + $0xe8] sm:$0xff]
    %v174 = vld [vmem:[#allocation6 + $0xf0] sm:$0xff]
    %v175 = vld [vmem:[#allocation6 + $0xf8] sm:$0xff]
    %s176 = scalar_lea.vmem %s3, 2
    %v177 = vld [vmem:[%s176] sm:$0x3]
    %v179 = vlaneseq
    %v180 = vshrl.u32 %v179, 7
    %v181 = vsub.s32 0, %v180
    %v182 = vrot.slane %v177, %v181
    %v183 = vlaneseq
    %v184 = vshrl.u32 %v183, 7
    %v185 = vsub.s32 1, %v184
    %v186 = vrot.slane %v177, %v185
    %v221 = vunpack.c.l.b16 %v144
    %v222 = vunpack.c.h.b16 %v144
    %v223 = vunpack.c.l.b16 %v145
    %v224 = vunpack.c.h.b16 %v145
    %v225 = vunpack.c.l.b16 %v146
    %v226 = vunpack.c.h.b16 %v146
    %v227 = vunpack.c.l.b16 %v147
    %v228 = vunpack.c.h.b16 %v147
    %v229 = vunpack.c.l.b16 %v148
    %v230 = vunpack.c.h.b16 %v148
    %v231 = vunpack.c.l.b16 %v149
    %v232 = vunpack.c.h.b16 %v149
    %v233 = vunpack.c.l.b16 %v150
    %v234 = vunpack.c.h.b16 %v150
    %v235 = vunpack.c.l.b16 %v151
    %v236 = vunpack.c.h.b16 %v151
    %v237 = vunpack.c.l.b16 %v152
    %v238 = vunpack.c.h.b16 %v152
    %v239 = vunpack.c.l.b16 %v153
    %v240 = vunpack.c.h.b16 %v153
    %v241 = vunpack.c.l.b16 %v154
    %v242 = vunpack.c.h.b16 %v154
    %v243 = vunpack.c.l.b16 %v155
    %v244 = vunpack.c.h.b16 %v155
    %v245 = vunpack.c.l.b16 %v156
    %v246 = vunpack.c.h.b16 %v156
    %v247 = vunpack.c.l.b16 %v157
    %v248 = vunpack.c.h.b16 %v157
    %v249 = vunpack.c.l.b16 %v158
    %v250 = vunpack.c.h.b16 %v158
    %v251 = vunpack.c.l.b16 %v159
    %v252 = vunpack.c.h.b16 %v159
    %v253 = vunpack.c.l.b16 %v160
    %v254 = vunpack.c.h.b16 %v160
    %v255 = vunpack.c.l.b16 %v161
    %v256 = vunpack.c.h.b16 %v161
    %v257 = vunpack.c.l.b16 %v162
    %v258 = vunpack.c.h.b16 %v162
    %v259 = vunpack.c.l.b16 %v163
    %v260 = vunpack.c.h.b16 %v163
    %v261 = vunpack.c.l.b16 %v164
    %v262 = vunpack.c.h.b16 %v164
    %v263 = vunpack.c.l.b16 %v165
    %v264 = vunpack.c.h.b16 %v165
    %v265 = vunpack.c.l.b16 %v166
    %v266 = vunpack.c.h.b16 %v166
    %v267 = vunpack.c.l.b16 %v167
    %v268 = vunpack.c.h.b16 %v167
    %v269 = vunpack.c.l.b16 %v168
    %v270 = vunpack.c.h.b16 %v168
    %v271 = vunpack.c.l.b16 %v169
    %v272 = vunpack.c.h.b16 %v169
    %v273 = vunpack.c.l.b16 %v170
    %v274 = vunpack.c.h.b16 %v170
    %v275 = vunpack.c.l.b16 %v171
    %v276 = vunpack.c.h.b16 %v171
    %v277 = vunpack.c.l.b16 %v172
    %v278 = vunpack.c.h.b16 %v172
    %v279 = vunpack.c.l.b16 %v173
    %v280 = vunpack.c.h.b16 %v173
    %v281 = vunpack.c.l.b16 %v174
    %v282 = vunpack.c.h.b16 %v174
    %v283 = vunpack.c.l.b16 %v175
    %v284 = vunpack.c.h.b16 %v175
    %v285 = vpack.c.b16 %v223, %v221
    %v286 = vpack.c.b16 %v224, %v222
    %v287 = vpack.c.b16 %v227, %v225
    %v288 = vpack.c.b16 %v228, %v226
    %v289 = vpack.c.b16 %v231, %v229
    %v290 = vpack.c.b16 %v232, %v230
    %v291 = vpack.c.b16 %v235, %v233
    %v292 = vpack.c.b16 %v236, %v234
    %v293 = vpack.c.b16 %v239, %v237
    %v294 = vpack.c.b16 %v240, %v238
    %v295 = vpack.c.b16 %v243, %v241
    %v296 = vpack.c.b16 %v244, %v242
    %v297 = vpack.c.b16 %v247, %v245
    %v298 = vpack.c.b16 %v248, %v246
    %v299 = vpack.c.b16 %v251, %v249
    %v300 = vpack.c.b16 %v252, %v250
    %v301 = vpack.c.b16 %v255, %v253
    %v302 = vpack.c.b16 %v256, %v254
    %v303 = vpack.c.b16 %v259, %v257
    %v304 = vpack.c.b16 %v260, %v258
    %v305 = vpack.c.b16 %v263, %v261
    %v306 = vpack.c.b16 %v264, %v262
    %v307 = vpack.c.b16 %v267, %v265
    %v308 = vpack.c.b16 %v268, %v266
    %v309 = vpack.c.b16 %v271, %v269
    %v310 = vpack.c.b16 %v272, %v270
    %v311 = vpack.c.b16 %v275, %v273
    %v312 = vpack.c.b16 %v276, %v274
    %v313 = vpack.c.b16 %v279, %v277
    %v314 = vpack.c.b16 %v280, %v278
    %v315 = vpack.c.b16 %v283, %v281
    %v316 = vpack.c.b16 %v284, %v282
    %349 = vmatprep.subr.bf16.mxu0 %v286
    %350 = vmatpush1.bf16.msra.mxu0 %v285
    %351 = vmatprep.subr.bf16.mxu0 %v288
    %352 = vmatpush1.bf16.msra.mxu0 %v287
    %353 = vmatprep.subr.bf16.mxu0 %v290
    %354 = vmatpush1.bf16.msra.mxu0 %v289
    %355 = vmatprep.subr.bf16.mxu0 %v292
    %356 = vmatpush1.bf16.msra.mxu0 %v291
    %357 = vmatprep.subr.bf16.mxu0 %v294
    %358 = vmatpush1.bf16.msra.mxu0 %v293
    %359 = vmatprep.subr.bf16.mxu0 %v296
    %360 = vmatpush1.bf16.msra.mxu0 %v295
    %361 = vmatprep.subr.bf16.mxu0 %v298
    %362 = vmatpush1.bf16.msra.mxu0 %v297
    %363 = vmatprep.subr.bf16.mxu0 %v300
    %364 = vmatpush1.bf16.msra.mxu0 %v299
    %365 = vmatprep.subr.bf16.mxu0 %v302
    %366 = vmatpush1.bf16.msra.mxu0 %v301
    %367 = vmatprep.subr.bf16.mxu0 %v304
    %368 = vmatpush1.bf16.msra.mxu0 %v303
    %369 = vmatprep.subr.bf16.mxu0 %v306
    %370 = vmatpush1.bf16.msra.mxu0 %v305
    %371 = vmatprep.subr.bf16.mxu0 %v308
    %372 = vmatpush1.bf16.msra.mxu0 %v307
    %373 = vmatprep.subr.bf16.mxu0 %v310
    %374 = vmatpush1.bf16.msra.mxu0 %v309
    %375 = vmatprep.subr.bf16.mxu0 %v312
    %376 = vmatpush1.bf16.msra.mxu0 %v311
    %377 = vmatprep.subr.bf16.mxu0 %v314
    %378 = vmatpush1.bf16.msra.mxu0 %v313
    %379 = vmatprep.subr.bf16.mxu0 %v316
    %380 = vmatpush1.bf16.msra.mxu0 %v315
    %381 = vmatprep.mubr.bf16.mxu0 %v143
    %382 = vmatmul.mubr.bf16.gmra.mrb[0].mxu0 %v142
    %v383 = vpop.f32.mrb[0].mxu0
    %v384 = vadd.f32 %v182, %v383
    %v385 = vpop.f32.mrb[0].mxu0
    %v386 = vadd.f32 %v186, %v385
    %v387 = vpop.f32.mrb[0].mxu0
    %v388 = vpop.f32.mrb[0].mxu0
    %389 = vdwg.mxu0
    %v390 = vmax.f32 %v384, 0.0
    %v391 = vmax.f32 %v386, 0.0
    %v392 = vpack.c.bf16 %v390, %v390
    %v393 = vpack.c.bf16 %v391, %v391
    %s394 = scalar_lea.vmem [#allocation6], 256
    %v395 = vld [vmem:[%s394] sm:$0xff]
    %v396 = vld [vmem:[%s394 + $0x8] sm:$0xff]
    %v397 = vld [vmem:[%s394 + $0x10] sm:$0xff]
    %v398 = vld [vmem:[%s394 + $0x18] sm:$0xff]
    %v399 = vld [vmem:[%s394 + $0x20] sm:$0xff]
    %v400 = vld [vmem:[%s394 + $0x28] sm:$0xff]
    %v401 = vld [vmem:[%s394 + $0x30] sm:$0xff]
    %v402 = vld [vmem:[%s394 + $0x38] sm:$0xff]
    %v403 = vld [vmem:[%s394 + $0x40] sm:$0xff]
    %v404 = vld [vmem:[%s394 + $0x48] sm:$0xff]
    %v405 = vld [vmem:[%s394 + $0x50] sm:$0xff]
    %v406 = vld [vmem:[%s394 + $0x58] sm:$0xff]
    %v407 = vld [vmem:[%s394 + $0x60] sm:$0xff]
    %v408 = vld [vmem:[%s394 + $0x68] sm:$0xff]
    %v409 = vld [vmem:[%s394 + $0x70] sm:$0xff]
    %v410 = vld [vmem:[%s394 + $0x78] sm:$0xff]
    %v411 = vld [vmem:[%s394 + $0x80] sm:$0xff]
    %v412 = vld [vmem:[%s394 + $0x88] sm:$0xff]
    %v413 = vld [vmem:[%s394 + $0x90] sm:$0xff]
    %v414 = vld [vmem:[%s394 + $0x98] sm:$0xff]
    %v415 = vld [vmem:[%s394 + $0xa0] sm:$0xff]
    %v416 = vld [vmem:[%s394 + $0xa8] sm:$0xff]
    %v417 = vld [vmem:[%s394 + $0xb0] sm:$0xff]
    %v418 = vld [vmem:[%s394 + $0xb8] sm:$0xff]
    %v419 = vld [vmem:[%s394 + $0xc0] sm:$0xff]
    %v420 = vld [vmem:[%s394 + $0xc8] sm:$0xff]
    %v421 = vld [vmem:[%s394 + $0xd0] sm:$0xff]
    %v422 = vld [vmem:[%s394 + $0xd8] sm:$0xff]
    %v423 = vld [vmem:[%s394 + $0xe0] sm:$0xff]
    %v424 = vld [vmem:[%s394 + $0xe8] sm:$0xff]
    %v425 = vld [vmem:[%s394 + $0xf0] sm:$0xff]
    %v426 = vld [vmem:[%s394 + $0xf8] sm:$0xff]
    %s427 = scalar_lea.vmem %s3, 4
    %v428 = vld [vmem:[%s427] sm:$0x3]
    %v430 = vlaneseq
    %v431 = vshrl.u32 %v430, 7
    %v432 = vsub.s32 0, %v431
    %v433 = vrot.slane %v428, %v432
    %v434 = vlaneseq
    %v435 = vshrl.u32 %v434, 7
    %v436 = vsub.s32 1, %v435
    %v437 = vrot.slane %v428, %v436
    %v472 = vunpack.c.l.b16 %v395
    %v473 = vunpack.c.h.b16 %v395
    %v474 = vunpack.c.l.b16 %v396
    %v475 = vunpack.c.h.b16 %v396
    %v476 = vunpack.c.l.b16 %v397
    %v477 = vunpack.c.h.b16 %v397
    %v478 = vunpack.c.l.b16 %v398
    %v479 = vunpack.c.h.b16 %v398
    %v480 = vunpack.c.l.b16 %v399
    %v481 = vunpack.c.h.b16 %v399
    %v482 = vunpack.c.l.b16 %v400
    %v483 = vunpack.c.h.b16 %v400
    %v484 = vunpack.c.l.b16 %v401
    %v485 = vunpack.c.h.b16 %v401
    %v486 = vunpack.c.l.b16 %v402
    %v487 = vunpack.c.h.b16 %v402
    %v488 = vunpack.c.l.b16 %v403
    %v489 = vunpack.c.h.b16 %v403
    %v490 = vunpack.c.l.b16 %v404
    %v491 = vunpack.c.h.b16 %v404
    %v492 = vunpack.c.l.b16 %v405
    %v493 = vunpack.c.h.b16 %v405
    %v494 = vunpack.c.l.b16 %v406
    %v495 = vunpack.c.h.b16 %v406
    %v496 = vunpack.c.l.b16 %v407
    %v497 = vunpack.c.h.b16 %v407
    %v498 = vunpack.c.l.b16 %v408
    %v499 = vunpack.c.h.b16 %v408
    %v500 = vunpack.c.l.b16 %v409
    %v501 = vunpack.c.h.b16 %v409
    %v502 = vunpack.c.l.b16 %v410
    %v503 = vunpack.c.h.b16 %v410
    %v504 = vunpack.c.l.b16 %v411
    %v505 = vunpack.c.h.b16 %v411
    %v506 = vunpack.c.l.b16 %v412
    %v507 = vunpack.c.h.b16 %v412
    %v508 = vunpack.c.l.b16 %v413
    %v509 = vunpack.c.h.b16 %v413
    %v510 = vunpack.c.l.b16 %v414
    %v511 = vunpack.c.h.b16 %v414
    %v512 = vunpack.c.l.b16 %v415
    %v513 = vunpack.c.h.b16 %v415
    %v514 = vunpack.c.l.b16 %v416
    %v515 = vunpack.c.h.b16 %v416
    %v516 = vunpack.c.l.b16 %v417
    %v517 = vunpack.c.h.b16 %v417
    %v518 = vunpack.c.l.b16 %v418
    %v519 = vunpack.c.h.b16 %v418
    %v520 = vunpack.c.l.b16 %v419
    %v521 = vunpack.c.h.b16 %v419
    %v522 = vunpack.c.l.b16 %v420
    %v523 = vunpack.c.h.b16 %v420
    %v524 = vunpack.c.l.b16 %v421
    %v525 = vunpack.c.h.b16 %v421
    %v526 = vunpack.c.l.b16 %v422
    %v527 = vunpack.c.h.b16 %v422
    %v528 = vunpack.c.l.b16 %v423
    %v529 = vunpack.c.h.b16 %v423
    %v530 = vunpack.c.l.b16 %v424
    %v531 = vunpack.c.h.b16 %v424
    %v532 = vunpack.c.l.b16 %v425
    %v533 = vunpack.c.h.b16 %v425
    %v534 = vunpack.c.l.b16 %v426
    %v535 = vunpack.c.h.b16 %v426
    %v536 = vpack.c.b16 %v474, %v472
    %v537 = vpack.c.b16 %v475, %v473
    %v538 = vpack.c.b16 %v478, %v476
    %v539 = vpack.c.b16 %v479, %v477
    %v540 = vpack.c.b16 %v482, %v480
    %v541 = vpack.c.b16 %v483, %v481
    %v542 = vpack.c.b16 %v486, %v484
    %v543 = vpack.c.b16 %v487, %v485
    %v544 = vpack.c.b16 %v490, %v488
    %v545 = vpack.c.b16 %v491, %v489
    %v546 = vpack.c.b16 %v494, %v492
    %v547 = vpack.c.b16 %v495, %v493
    %v548 = vpack.c.b16 %v498, %v496
    %v549 = vpack.c.b16 %v499, %v497
    %v550 = vpack.c.b16 %v502, %v500
    %v551 = vpack.c.b16 %v503, %v501
    %v552 = vpack.c.b16 %v506, %v504
    %v553 = vpack.c.b16 %v507, %v505
    %v554 = vpack.c.b16 %v510, %v508
    %v555 = vpack.c.b16 %v511, %v509
    %v556 = vpack.c.b16 %v514, %v512
    %v557 = vpack.c.b16 %v515, %v513
    %v558 = vpack.c.b16 %v518, %v516
    %v559 = vpack.c.b16 %v519, %v517
    %v560 = vpack.c.b16 %v522, %v520
    %v561 = vpack.c.b16 %v523, %v521
    %v562 = vpack.c.b16 %v526, %v524
    %v563 = vpack.c.b16 %v527, %v525
    %v564 = vpack.c.b16 %v530, %v528
    %v565 = vpack.c.b16 %v531, %v529
    %v566 = vpack.c.b16 %v534, %v532
    %v567 = vpack.c.b16 %v535, %v533
    %600 = vmatprep.subr.bf16.mxu0 %v537
    %601 = vmatpush1.bf16.msra.mxu0 %v536
    %602 = vmatprep.subr.bf16.mxu0 %v539
    %603 = vmatpush1.bf16.msra.mxu0 %v538
    %604 = vmatprep.subr.bf16.mxu0 %v541
    %605 = vmatpush1.bf16.msra.mxu0 %v540
    %606 = vmatprep.subr.bf16.mxu0 %v543
    %607 = vmatpush1.bf16.msra.mxu0 %v542
    %608 = vmatprep.subr.bf16.mxu0 %v545
    %609 = vmatpush1.bf16.msra.mxu0 %v544
    %610 = vmatprep.subr.bf16.mxu0 %v547
    %611 = vmatpush1.bf16.msra.mxu0 %v546
    %612 = vmatprep.subr.bf16.mxu0 %v549
    %613 = vmatpush1.bf16.msra.mxu0 %v548
    %614 = vmatprep.subr.bf16.mxu0 %v551
    %615 = vmatpush1.bf16.msra.mxu0 %v550
    %616 = vmatprep.subr.bf16.mxu0 %v553
    %617 = vmatpush1.bf16.msra.mxu0 %v552
    %618 = vmatprep.subr.bf16.mxu0 %v555
    %619 = vmatpush1.bf16.msra.mxu0 %v554
    %620 = vmatprep.subr.bf16.mxu0 %v557
    %621 = vmatpush1.bf16.msra.mxu0 %v556
    %622 = vmatprep.subr.bf16.mxu0 %v559
    %623 = vmatpush1.bf16.msra.mxu0 %v558
    %624 = vmatprep.subr.bf16.mxu0 %v561
    %625 = vmatpush1.bf16.msra.mxu0 %v560
    %626 = vmatprep.subr.bf16.mxu0 %v563
    %627 = vmatpush1.bf16.msra.mxu0 %v562
    %628 = vmatprep.subr.bf16.mxu0 %v565
    %629 = vmatpush1.bf16.msra.mxu0 %v564
    %630 = vmatprep.subr.bf16.mxu0 %v567
    %631 = vmatpush1.bf16.msra.mxu0 %v566
    %632 = vmatprep.mubr.bf16.mxu0 %v393
    %633 = vmatmul.mubr.bf16.gmra.mrb[0].mxu0 %v392
    %v634 = vpop.f32.mrb[0].mxu0
    %v635 = vadd.f32 %v433, %v634
    %v636 = vpop.f32.mrb[0].mxu0
    %v637 = vadd.f32 %v437, %v636
    %v638 = vpop.f32.mrb[0].mxu0
    %v639 = vpop.f32.mrb[0].mxu0
    %640 = vdwg.mxu0
    %v641 = vmax.f32 %v635, 0.0
    %v642 = vmax.f32 %v637, 0.0
    %v643 = vpack.c.bf16 %v641, %v641
    %v644 = vpack.c.bf16 %v642, %v642
    %s645 = scalar_lea.vmem [#allocation6], 512
    %v646 = vld [vmem:[%s645] sm:$0xff]
    %v647 = vld [vmem:[%s645 + $0x8] sm:$0xff]
    %v648 = vld [vmem:[%s645 + $0x10] sm:$0xff]
    %v649 = vld [vmem:[%s645 + $0x18] sm:$0xff]
    %v650 = vld [vmem:[%s645 + $0x20] sm:$0xff]
    %v651 = vld [vmem:[%s645 + $0x28] sm:$0xff]
    %v652 = vld [vmem:[%s645 + $0x30] sm:$0xff]
    %v653 = vld [vmem:[%s645 + $0x38] sm:$0xff]
    %v654 = vld [vmem:[%s645 + $0x40] sm:$0xff]
    %v655 = vld [vmem:[%s645 + $0x48] sm:$0xff]
    %v656 = vld [vmem:[%s645 + $0x50] sm:$0xff]
    %v657 = vld [vmem:[%s645 + $0x58] sm:$0xff]
    %v658 = vld [vmem:[%s645 + $0x60] sm:$0xff]
    %v659 = vld [vmem:[%s645 + $0x68] sm:$0xff]
    %v660 = vld [vmem:[%s645 + $0x70] sm:$0xff]
    %v661 = vld [vmem:[%s645 + $0x78] sm:$0xff]
    %v662 = vld [vmem:[%s645 + $0x80] sm:$0xff]
    %v663 = vld [vmem:[%s645 + $0x88] sm:$0xff]
    %v664 = vld [vmem:[%s645 + $0x90] sm:$0xff]
    %v665 = vld [vmem:[%s645 + $0x98] sm:$0xff]
    %v666 = vld [vmem:[%s645 + $0xa0] sm:$0xff]
    %v667 = vld [vmem:[%s645 + $0xa8] sm:$0xff]
    %v668 = vld [vmem:[%s645 + $0xb0] sm:$0xff]
    %v669 = vld [vmem:[%s645 + $0xb8] sm:$0xff]
    %v670 = vld [vmem:[%s645 + $0xc0] sm:$0xff]
    %v671 = vld [vmem:[%s645 + $0xc8] sm:$0xff]
    %v672 = vld [vmem:[%s645 + $0xd0] sm:$0xff]
    %v673 = vld [vmem:[%s645 + $0xd8] sm:$0xff]
    %v674 = vld [vmem:[%s645 + $0xe0] sm:$0xff]
    %v675 = vld [vmem:[%s645 + $0xe8] sm:$0xff]
    %v676 = vld [vmem:[%s645 + $0xf0] sm:$0xff]
    %v677 = vld [vmem:[%s645 + $0xf8] sm:$0xff]
    %s678 = scalar_lea.vmem %s3, 6
    %v679 = vld [vmem:[%s678] sm:$0x3]
    %v681 = vlaneseq
    %v682 = vshrl.u32 %v681, 7
    %v683 = vsub.s32 0, %v682
    %v684 = vrot.slane %v679, %v683
    %v685 = vlaneseq
    %v686 = vshrl.u32 %v685, 7
    %v687 = vsub.s32 1, %v686
    %v688 = vrot.slane %v679, %v687
    %v723 = vunpack.c.l.b16 %v646
    %v724 = vunpack.c.h.b16 %v646
    %v725 = vunpack.c.l.b16 %v647
    %v726 = vunpack.c.h.b16 %v647
    %v727 = vunpack.c.l.b16 %v648
    %v728 = vunpack.c.h.b16 %v648
    %v729 = vunpack.c.l.b16 %v649
    %v730 = vunpack.c.h.b16 %v649
    %v731 = vunpack.c.l.b16 %v650
    %v732 = vunpack.c.h.b16 %v650
    %v733 = vunpack.c.l.b16 %v651
    %v734 = vunpack.c.h.b16 %v651
    %v735 = vunpack.c.l.b16 %v652
    %v736 = vunpack.c.h.b16 %v652
    %v737 = vunpack.c.l.b16 %v653
    %v738 = vunpack.c.h.b16 %v653
    %v739 = vunpack.c.l.b16 %v654
    %v740 = vunpack.c.h.b16 %v654
    %v741 = vunpack.c.l.b16 %v655
    %v742 = vunpack.c.h.b16 %v655
    %v743 = vunpack.c.l.b16 %v656
    %v744 = vunpack.c.h.b16 %v656
    %v745 = vunpack.c.l.b16 %v657
    %v746 = vunpack.c.h.b16 %v657
    %v747 = vunpack.c.l.b16 %v658
    %v748 = vunpack.c.h.b16 %v658
    %v749 = vunpack.c.l.b16 %v659
    %v750 = vunpack.c.h.b16 %v659
    %v751 = vunpack.c.l.b16 %v660
    %v752 = vunpack.c.h.b16 %v660
    %v753 = vunpack.c.l.b16 %v661
    %v754 = vunpack.c.h.b16 %v661
    %v755 = vunpack.c.l.b16 %v662
    %v756 = vunpack.c.h.b16 %v662
    %v757 = vunpack.c.l.b16 %v663
    %v758 = vunpack.c.h.b16 %v663
    %v759 = vunpack.c.l.b16 %v664
    %v760 = vunpack.c.h.b16 %v664
    %v761 = vunpack.c.l.b16 %v665
    %v762 = vunpack.c.h.b16 %v665
    %v763 = vunpack.c.l.b16 %v666
    %v764 = vunpack.c.h.b16 %v666
    %v765 = vunpack.c.l.b16 %v667
    %v766 = vunpack.c.h.b16 %v667
    %v767 = vunpack.c.l.b16 %v668
    %v768 = vunpack.c.h.b16 %v668
    %v769 = vunpack.c.l.b16 %v669
    %v770 = vunpack.c.h.b16 %v669
    %v771 = vunpack.c.l.b16 %v670
    %v772 = vunpack.c.h.b16 %v670
    %v773 = vunpack.c.l.b16 %v671
    %v774 = vunpack.c.h.b16 %v671
    %v775 = vunpack.c.l.b16 %v672
    %v776 = vunpack.c.h.b16 %v672
    %v777 = vunpack.c.l.b16 %v673
    %v778 = vunpack.c.h.b16 %v673
    %v779 = vunpack.c.l.b16 %v674
    %v780 = vunpack.c.h.b16 %v674
    %v781 = vunpack.c.l.b16 %v675
    %v782 = vunpack.c.h.b16 %v675
    %v783 = vunpack.c.l.b16 %v676
    %v784 = vunpack.c.h.b16 %v676
    %v785 = vunpack.c.l.b16 %v677
    %v786 = vunpack.c.h.b16 %v677
    %v787 = vpack.c.b16 %v725, %v723
    %v788 = vpack.c.b16 %v726, %v724
    %v789 = vpack.c.b16 %v729, %v727
    %v790 = vpack.c.b16 %v730, %v728
    %v791 = vpack.c.b16 %v733, %v731
    %v792 = vpack.c.b16 %v734, %v732
    %v793 = vpack.c.b16 %v737, %v735
    %v794 = vpack.c.b16 %v738, %v736
    %v795 = vpack.c.b16 %v741, %v739
    %v796 = vpack.c.b16 %v742, %v740
    %v797 = vpack.c.b16 %v745, %v743
    %v798 = vpack.c.b16 %v746, %v744
    %v799 = vpack.c.b16 %v749, %v747
    %v800 = vpack.c.b16 %v750, %v748
    %v801 = vpack.c.b16 %v753, %v751
    %v802 = vpack.c.b16 %v754, %v752
    %v803 = vpack.c.b16 %v757, %v755
    %v804 = vpack.c.b16 %v758, %v756
    %v805 = vpack.c.b16 %v761, %v759
    %v806 = vpack.c.b16 %v762, %v760
    %v807 = vpack.c.b16 %v765, %v763
    %v808 = vpack.c.b16 %v766, %v764
    %v809 = vpack.c.b16 %v769, %v767
    %v810 = vpack.c.b16 %v770, %v768
    %v811 = vpack.c.b16 %v773, %v771
    %v812 = vpack.c.b16 %v774, %v772
    %v813 = vpack.c.b16 %v777, %v775
    %v814 = vpack.c.b16 %v778, %v776
    %v815 = vpack.c.b16 %v781, %v779
    %v816 = vpack.c.b16 %v782, %v780
    %v817 = vpack.c.b16 %v785, %v783
    %v818 = vpack.c.b16 %v786, %v784
    %851 = vmatprep.subr.bf16.mxu0 %v788
    %852 = vmatpush1.bf16.msra.mxu0 %v787
    %853 = vmatprep.subr.bf16.mxu0 %v790
    %854 = vmatpush1.bf16.msra.mxu0 %v789
    %855 = vmatprep.subr.bf16.mxu0 %v792
    %856 = vmatpush1.bf16.msra.mxu0 %v791
    %857 = vmatprep.subr.bf16.mxu0 %v794
    %858 = vmatpush1.bf16.msra.mxu0 %v793
    %859 = vmatprep.subr.bf16.mxu0 %v796
    %860 = vmatpush1.bf16.msra.mxu0 %v795
    %861 = vmatprep.subr.bf16.mxu0 %v798
    %862 = vmatpush1.bf16.msra.mxu0 %v797
    %863 = vmatprep.subr.bf16.mxu0 %v800
    %864 = vmatpush1.bf16.msra.mxu0 %v799
    %865 = vmatprep.subr.bf16.mxu0 %v802
    %866 = vmatpush1.bf16.msra.mxu0 %v801
    %867 = vmatprep.subr.bf16.mxu0 %v804
    %868 = vmatpush1.bf16.msra.mxu0 %v803
    %869 = vmatprep.subr.bf16.mxu0 %v806
    %870 = vmatpush1.bf16.msra.mxu0 %v805
    %871 = vmatprep.subr.bf16.mxu0 %v808
    %872 = vmatpush1.bf16.msra.mxu0 %v807
    %873 = vmatprep.subr.bf16.mxu0 %v810
    %874 = vmatpush1.bf16.msra.mxu0 %v809
    %875 = vmatprep.subr.bf16.mxu0 %v812
    %876 = vmatpush1.bf16.msra.mxu0 %v811
    %877 = vmatprep.subr.bf16.mxu0 %v814
    %878 = vmatpush1.bf16.msra.mxu0 %v813
    %879 = vmatprep.subr.bf16.mxu0 %v816
    %880 = vmatpush1.bf16.msra.mxu0 %v815
    %881 = vmatprep.subr.bf16.mxu0 %v818
    %882 = vmatpush1.bf16.msra.mxu0 %v817
    %883 = vmatprep.mubr.bf16.mxu0 %v644
    %884 = vmatmul.mubr.bf16.gmra.mrb[0].mxu0 %v643
    %v885 = vpop.f32.mrb[0].mxu0
    %v886 = vadd.f32 %v684, %v885
    %v887 = vpop.f32.mrb[0].mxu0
    %v888 = vadd.f32 %v688, %v887
    %v889 = vpop.f32.mrb[0].mxu0
    %v890 = vpop.f32.mrb[0].mxu0
    %891 = vdwg.mxu0
    %v892 = vmax.f32 %v886, 0.0
    %v893 = vmax.f32 %v888, 0.0
    %v894 = vpack.c.bf16 %v892, %v892
    %v895 = vpack.c.bf16 %v893, %v893
    %s896 = scalar_lea.vmem [#allocation6], 768
    %v897 = vld [vmem:[%s896] sm:$0xff]
    %v898 = vld [vmem:[%s896 + $0x8] sm:$0xff]
    %v899 = vld [vmem:[%s896 + $0x10] sm:$0xff]
    %v900 = vld [vmem:[%s896 + $0x18] sm:$0xff]
    %v901 = vld [vmem:[%s896 + $0x20] sm:$0xff]
    %v902 = vld [vmem:[%s896 + $0x28] sm:$0xff]
    %v903 = vld [vmem:[%s896 + $0x30] sm:$0xff]
    %v904 = vld [vmem:[%s896 + $0x38] sm:$0xff]
    %v905 = vld [vmem:[%s896 + $0x40] sm:$0xff]
    %v906 = vld [vmem:[%s896 + $0x48] sm:$0xff]
    %v907 = vld [vmem:[%s896 + $0x50] sm:$0xff]
    %v908 = vld [vmem:[%s896 + $0x58] sm:$0xff]
    %v909 = vld [vmem:[%s896 + $0x60] sm:$0xff]
    %v910 = vld [vmem:[%s896 + $0x68] sm:$0xff]
    %v911 = vld [vmem:[%s896 + $0x70] sm:$0xff]
    %v912 = vld [vmem:[%s896 + $0x78] sm:$0xff]
    %v913 = vld [vmem:[%s896 + $0x80] sm:$0xff]
    %v914 = vld [vmem:[%s896 + $0x88] sm:$0xff]
    %v915 = vld [vmem:[%s896 + $0x90] sm:$0xff]
    %v916 = vld [vmem:[%s896 + $0x98] sm:$0xff]
    %v917 = vld [vmem:[%s896 + $0xa0] sm:$0xff]
    %v918 = vld [vmem:[%s896 + $0xa8] sm:$0xff]
    %v919 = vld [vmem:[%s896 + $0xb0] sm:$0xff]
    %v920 = vld [vmem:[%s896 + $0xb8] sm:$0xff]
    %v921 = vld [vmem:[%s896 + $0xc0] sm:$0xff]
    %v922 = vld [vmem:[%s896 + $0xc8] sm:$0xff]
    %v923 = vld [vmem:[%s896 + $0xd0] sm:$0xff]
    %v924 = vld [vmem:[%s896 + $0xd8] sm:$0xff]
    %v925 = vld [vmem:[%s896 + $0xe0] sm:$0xff]
    %v926 = vld [vmem:[%s896 + $0xe8] sm:$0xff]
    %v927 = vld [vmem:[%s896 + $0xf0] sm:$0xff]
    %v928 = vld [vmem:[%s896 + $0xf8] sm:$0xff]
    %s929 = scalar_lea.vmem %s3, 8
    %v930 = vld [vmem:[%s929] sm:$0x3]
    %v932 = vlaneseq
    %v933 = vshrl.u32 %v932, 7
    %v934 = vsub.s32 0, %v933
    %v935 = vrot.slane %v930, %v934
    %v936 = vlaneseq
    %v937 = vshrl.u32 %v936, 7
    %v938 = vsub.s32 1, %v937
    %v939 = vrot.slane %v930, %v938
    %v974 = vunpack.c.l.b16 %v897
    %v975 = vunpack.c.h.b16 %v897
    %v976 = vunpack.c.l.b16 %v898
    %v977 = vunpack.c.h.b16 %v898
    %v978 = vunpack.c.l.b16 %v899
    %v979 = vunpack.c.h.b16 %v899
    %v980 = vunpack.c.l.b16 %v900
    %v981 = vunpack.c.h.b16 %v900
    %v982 = vunpack.c.l.b16 %v901
    %v983 = vunpack.c.h.b16 %v901
    %v984 = vunpack.c.l.b16 %v902
    %v985 = vunpack.c.h.b16 %v902
    %v986 = vunpack.c.l.b16 %v903
    %v987 = vunpack.c.h.b16 %v903
    %v988 = vunpack.c.l.b16 %v904
    %v989 = vunpack.c.h.b16 %v904
    %v990 = vunpack.c.l.b16 %v905
    %v991 = vunpack.c.h.b16 %v905
    %v992 = vunpack.c.l.b16 %v906
    %v993 = vunpack.c.h.b16 %v906
    %v994 = vunpack.c.l.b16 %v907
    %v995 = vunpack.c.h.b16 %v907
    %v996 = vunpack.c.l.b16 %v908
    %v997 = vunpack.c.h.b16 %v908
    %v998 = vunpack.c.l.b16 %v909
    %v999 = vunpack.c.h.b16 %v909
    %v1000 = vunpack.c.l.b16 %v910
    %v1001 = vunpack.c.h.b16 %v910
    %v1002 = vunpack.c.l.b16 %v911
    %v1003 = vunpack.c.h.b16 %v911
    %v1004 = vunpack.c.l.b16 %v912
    %v1005 = vunpack.c.h.b16 %v912
    %v1006 = vunpack.c.l.b16 %v913
    %v1007 = vunpack.c.h.b16 %v913
    %v1008 = vunpack.c.l.b16 %v914
    %v1009 = vunpack.c.h.b16 %v914
    %v1010 = vunpack.c.l.b16 %v915
    %v1011 = vunpack.c.h.b16 %v915
    %v1012 = vunpack.c.l.b16 %v916
    %v1013 = vunpack.c.h.b16 %v916
    %v1014 = vunpack.c.l.b16 %v917
    %v1015 = vunpack.c.h.b16 %v917
    %v1016 = vunpack.c.l.b16 %v918
    %v1017 = vunpack.c.h.b16 %v918
    %v1018 = vunpack.c.l.b16 %v919
    %v1019 = vunpack.c.h.b16 %v919
    %v1020 = vunpack.c.l.b16 %v920
    %v1021 = vunpack.c.h.b16 %v920
    %v1022 = vunpack.c.l.b16 %v921
    %v1023 = vunpack.c.h.b16 %v921
    %v1024 = vunpack.c.l.b16 %v922
    %v1025 = vunpack.c.h.b16 %v922
    %v1026 = vunpack.c.l.b16 %v923
    %v1027 = vunpack.c.h.b16 %v923
    %v1028 = vunpack.c.l.b16 %v924
    %v1029 = vunpack.c.h.b16 %v924
    %v1030 = vunpack.c.l.b16 %v925
    %v1031 = vunpack.c.h.b16 %v925
    %v1032 = vunpack.c.l.b16 %v926
    %v1033 = vunpack.c.h.b16 %v926
    %v1034 = vunpack.c.l.b16 %v927
    %v1035 = vunpack.c.h.b16 %v927
    %v1036 = vunpack.c.l.b16 %v928
    %v1037 = vunpack.c.h.b16 %v928
    %v1038 = vpack.c.b16 %v976, %v974
    %v1039 = vpack.c.b16 %v977, %v975
    %v1040 = vpack.c.b16 %v980, %v978
    %v1041 = vpack.c.b16 %v981, %v979
    %v1042 = vpack.c.b16 %v984, %v982
    %v1043 = vpack.c.b16 %v985, %v983
    %v1044 = vpack.c.b16 %v988, %v986
    %v1045 = vpack.c.b16 %v989, %v987
    %v1046 = vpack.c.b16 %v992, %v990
    %v1047 = vpack.c.b16 %v993, %v991
    %v1048 = vpack.c.b16 %v996, %v994
    %v1049 = vpack.c.b16 %v997, %v995
    %v1050 = vpack.c.b16 %v1000, %v998
    %v1051 = vpack.c.b16 %v1001, %v999
    %v1052 = vpack.c.b16 %v1004, %v1002
    %v1053 = vpack.c.b16 %v1005, %v1003
    %v1054 = vpack.c.b16 %v1008, %v1006
    %v1055 = vpack.c.b16 %v1009, %v1007
    %v1056 = vpack.c.b16 %v1012, %v1010
    %v1057 = vpack.c.b16 %v1013, %v1011
    %v1058 = vpack.c.b16 %v1016, %v1014
    %v1059 = vpack.c.b16 %v1017, %v1015
    %v1060 = vpack.c.b16 %v1020, %v1018
    %v1061 = vpack.c.b16 %v1021, %v1019
    %v1062 = vpack.c.b16 %v1024, %v1022
    %v1063 = vpack.c.b16 %v1025, %v1023
    %v1064 = vpack.c.b16 %v1028, %v1026
    %v1065 = vpack.c.b16 %v1029, %v1027
    %v1066 = vpack.c.b16 %v1032, %v1030
    %v1067 = vpack.c.b16 %v1033, %v1031
    %v1068 = vpack.c.b16 %v1036, %v1034
    %v1069 = vpack.c.b16 %v1037, %v1035
    %1102 = vmatprep.subr.bf16.mxu0 %v1039
    %1103 = vmatpush1.bf16.msra.mxu0 %v1038
    %1104 = vmatprep.subr.bf16.mxu0 %v1041
    %1105 = vmatpush1.bf16.msra.mxu0 %v1040
    %1106 = vmatprep.subr.bf16.mxu0 %v1043
    %1107 = vmatpush1.bf16.msra.mxu0 %v1042
    %1108 = vmatprep.subr.bf16.mxu0 %v1045
    %1109 = vmatpush1.bf16.msra.mxu0 %v1044
    %1110 = vmatprep.subr.bf16.mxu0 %v1047
    %1111 = vmatpush1.bf16.msra.mxu0 %v1046
    %1112 = vmatprep.subr.bf16.mxu0 %v1049
    %1113 = vmatpush1.bf16.msra.mxu0 %v1048
    %1114 = vmatprep.subr.bf16.mxu0 %v1051
    %1115 = vmatpush1.bf16.msra.mxu0 %v1050
    %1116 = vmatprep.subr.bf16.mxu0 %v1053
    %1117 = vmatpush1.bf16.msra.mxu0 %v1052
    %1118 = vmatprep.subr.bf16.mxu0 %v1055
    %1119 = vmatpush1.bf16.msra.mxu0 %v1054
    %1120 = vmatprep.subr.bf16.mxu0 %v1057
    %1121 = vmatpush1.bf16.msra.mxu0 %v1056
    %1122 = vmatprep.subr.bf16.mxu0 %v1059
    %1123 = vmatpush1.bf16.msra.mxu0 %v1058
    %1124 = vmatprep.subr.bf16.mxu0 %v1061
    %1125 = vmatpush1.bf16.msra.mxu0 %v1060
    %1126 = vmatprep.subr.bf16.mxu0 %v1063
    %1127 = vmatpush1.bf16.msra.mxu0 %v1062
    %1128 = vmatprep.subr.bf16.mxu0 %v1065
    %1129 = vmatpush1.bf16.msra.mxu0 %v1064
    %1130 = vmatprep.subr.bf16.mxu0 %v1067
    %1131 = vmatpush1.bf16.msra.mxu0 %v1066
    %1132 = vmatprep.subr.bf16.mxu0 %v1069
    %1133 = vmatpush1.bf16.msra.mxu0 %v1068
    %1134 = vmatprep.mubr.bf16.mxu0 %v895
    %1135 = vmatmul.mubr.bf16.gmra.mrb[0].mxu0 %v894
    %v1136 = vpop.f32.mrb[0].mxu0
    %v1137 = vadd.f32 %v935, %v1136
    %v1138 = vpop.f32.mrb[0].mxu0
    %v1139 = vadd.f32 %v939, %v1138
    %v1140 = vpop.f32.mrb[0].mxu0
    %v1141 = vpop.f32.mrb[0].mxu0
    %1142 = vdwg.mxu0
    %v1143 = vmax.f32 %v1137, 0.0
    %v1144 = vmax.f32 %v1139, 0.0
    %v1145 = vpack.c.bf16 %v1143, %v1143
    %v1146 = vpack.c.bf16 %v1144, %v1144
    %s1147 = scalar_lea.vmem [#allocation6], 1024
    %v1148 = vld [vmem:[%s1147] sm:$0xff]
    %v1149 = vld [vmem:[%s1147 + $0x8] sm:$0xff]
    %v1150 = vld [vmem:[%s1147 + $0x10] sm:$0xff]
    %v1151 = vld [vmem:[%s1147 + $0x18] sm:$0xff]
    %v1152 = vld [vmem:[%s1147 + $0x20] sm:$0xff]
    %v1153 = vld [vmem:[%s1147 + $0x28] sm:$0xff]
    %v1154 = vld [vmem:[%s1147 + $0x30] sm:$0xff]
    %v1155 = vld [vmem:[%s1147 + $0x38] sm:$0xff]
    %v1156 = vld [vmem:[%s1147 + $0x40] sm:$0xff]
    %v1157 = vld [vmem:[%s1147 + $0x48] sm:$0xff]
    %v1158 = vld [vmem:[%s1147 + $0x50] sm:$0xff]
    %v1159 = vld [vmem:[%s1147 + $0x58] sm:$0xff]
    %v1160 = vld [vmem:[%s1147 + $0x60] sm:$0xff]
    %v1161 = vld [vmem:[%s1147 + $0x68] sm:$0xff]
    %v1162 = vld [vmem:[%s1147 + $0x70] sm:$0xff]
    %v1163 = vld [vmem:[%s1147 + $0x78] sm:$0xff]
    %v1164 = vld [vmem:[%s1147 + $0x80] sm:$0xff]
    %v1165 = vld [vmem:[%s1147 + $0x88] sm:$0xff]
    %v1166 = vld [vmem:[%s1147 + $0x90] sm:$0xff]
    %v1167 = vld [vmem:[%s1147 + $0x98] sm:$0xff]
    %v1168 = vld [vmem:[%s1147 + $0xa0] sm:$0xff]
    %v1169 = vld [vmem:[%s1147 + $0xa8] sm:$0xff]
    %v1170 = vld [vmem:[%s1147 + $0xb0] sm:$0xff]
    %v1171 = vld [vmem:[%s1147 + $0xb8] sm:$0xff]
    %v1172 = vld [vmem:[%s1147 + $0xc0] sm:$0xff]
    %v1173 = vld [vmem:[%s1147 + $0xc8] sm:$0xff]
    %v1174 = vld [vmem:[%s1147 + $0xd0] sm:$0xff]
    %v1175 = vld [vmem:[%s1147 + $0xd8] sm:$0xff]
    %v1176 = vld [vmem:[%s1147 + $0xe0] sm:$0xff]
    %v1177 = vld [vmem:[%s1147 + $0xe8] sm:$0xff]
    %v1178 = vld [vmem:[%s1147 + $0xf0] sm:$0xff]
    %v1179 = vld [vmem:[%s1147 + $0xf8] sm:$0xff]
    %s1180 = scalar_lea.vmem %s3, 10
    %v1181 = vld [vmem:[%s1180] sm:$0x3]
    %v1183 = vlaneseq
    %v1184 = vshrl.u32 %v1183, 7
    %v1185 = vsub.s32 0, %v1184
    %v1186 = vrot.slane %v1181, %v1185
    %v1187 = vlaneseq
    %v1188 = vshrl.u32 %v1187, 7
    %v1189 = vsub.s32 1, %v1188
    %v1190 = vrot.slane %v1181, %v1189
    %v1225 = vunpack.c.l.b16 %v1148
    %v1226 = vunpack.c.h.b16 %v1148
    %v1227 = vunpack.c.l.b16 %v1149
    %v1228 = vunpack.c.h.b16 %v1149
    %v1229 = vunpack.c.l.b16 %v1150
    %v1230 = vunpack.c.h.b16 %v1150
    %v1231 = vunpack.c.l.b16 %v1151
    %v1232 = vunpack.c.h.b16 %v1151
    %v1233 = vunpack.c.l.b16 %v1152
    %v1234 = vunpack.c.h.b16 %v1152
    %v1235 = vunpack.c.l.b16 %v1153
    %v1236 = vunpack.c.h.b16 %v1153
    %v1237 = vunpack.c.l.b16 %v1154
    %v1238 = vunpack.c.h.b16 %v1154
    %v1239 = vunpack.c.l.b16 %v1155
    %v1240 = vunpack.c.h.b16 %v1155
    %v1241 = vunpack.c.l.b16 %v1156
    %v1242 = vunpack.c.h.b16 %v1156
    %v1243 = vunpack.c.l.b16 %v1157
    %v1244 = vunpack.c.h.b16 %v1157
    %v1245 = vunpack.c.l.b16 %v1158
    %v1246 = vunpack.c.h.b16 %v1158
    %v1247 = vunpack.c.l.b16 %v1159
    %v1248 = vunpack.c.h.b16 %v1159
    %v1249 = vunpack.c.l.b16 %v1160
    %v1250 = vunpack.c.h.b16 %v1160
    %v1251 = vunpack.c.l.b16 %v1161
    %v1252 = vunpack.c.h.b16 %v1161
    %v1253 = vunpack.c.l.b16 %v1162
    %v1254 = vunpack.c.h.b16 %v1162
    %v1255 = vunpack.c.l.b16 %v1163
    %v1256 = vunpack.c.h.b16 %v1163
    %v1257 = vunpack.c.l.b16 %v1164
    %v1258 = vunpack.c.h.b16 %v1164
    %v1259 = vunpack.c.l.b16 %v1165
    %v1260 = vunpack.c.h.b16 %v1165
    %v1261 = vunpack.c.l.b16 %v1166
    %v1262 = vunpack.c.h.b16 %v1166
    %v1263 = vunpack.c.l.b16 %v1167
    %v1264 = vunpack.c.h.b16 %v1167
    %v1265 = vunpack.c.l.b16 %v1168
    %v1266 = vunpack.c.h.b16 %v1168
    %v1267 = vunpack.c.l.b16 %v1169
    %v1268 = vunpack.c.h.b16 %v1169
    %v1269 = vunpack.c.l.b16 %v1170
    %v1270 = vunpack.c.h.b16 %v1170
    %v1271 = vunpack.c.l.b16 %v1171
    %v1272 = vunpack.c.h.b16 %v1171
    %v1273 = vunpack.c.l.b16 %v1172
    %v1274 = vunpack.c.h.b16 %v1172
    %v1275 = vunpack.c.l.b16 %v1173
    %v1276 = vunpack.c.h.b16 %v1173
    %v1277 = vunpack.c.l.b16 %v1174
    %v1278 = vunpack.c.h.b16 %v1174
    %v1279 = vunpack.c.l.b16 %v1175
    %v1280 = vunpack.c.h.b16 %v1175
    %v1281 = vunpack.c.l.b16 %v1176
    %v1282 = vunpack.c.h.b16 %v1176
    %v1283 = vunpack.c.l.b16 %v1177
    %v1284 = vunpack.c.h.b16 %v1177
    %v1285 = vunpack.c.l.b16 %v1178
    %v1286 = vunpack.c.h.b16 %v1178
    %v1287 = vunpack.c.l.b16 %v1179
    %v1288 = vunpack.c.h.b16 %v1179
    %v1289 = vpack.c.b16 %v1227, %v1225
    %v1290 = vpack.c.b16 %v1228, %v1226
    %v1291 = vpack.c.b16 %v1231, %v1229
    %v1292 = vpack.c.b16 %v1232, %v1230
    %v1293 = vpack.c.b16 %v1235, %v1233
    %v1294 = vpack.c.b16 %v1236, %v1234
    %v1295 = vpack.c.b16 %v1239, %v1237
    %v1296 = vpack.c.b16 %v1240, %v1238
    %v1297 = vpack.c.b16 %v1243, %v1241
    %v1298 = vpack.c.b16 %v1244, %v1242
    %v1299 = vpack.c.b16 %v1247, %v1245
    %v1300 = vpack.c.b16 %v1248, %v1246
    %v1301 = vpack.c.b16 %v1251, %v1249
    %v1302 = vpack.c.b16 %v1252, %v1250
    %v1303 = vpack.c.b16 %v1255, %v1253
    %v1304 = vpack.c.b16 %v1256, %v1254
    %v1305 = vpack.c.b16 %v1259, %v1257
    %v1306 = vpack.c.b16 %v1260, %v1258
    %v1307 = vpack.c.b16 %v1263, %v1261
    %v1308 = vpack.c.b16 %v1264, %v1262
    %v1309 = vpack.c.b16 %v1267, %v1265
    %v1310 = vpack.c.b16 %v1268, %v1266
    %v1311 = vpack.c.b16 %v1271, %v1269
    %v1312 = vpack.c.b16 %v1272, %v1270
    %v1313 = vpack.c.b16 %v1275, %v1273
    %v1314 = vpack.c.b16 %v1276, %v1274
    %v1315 = vpack.c.b16 %v1279, %v1277
    %v1316 = vpack.c.b16 %v1280, %v1278
    %v1317 = vpack.c.b16 %v1283, %v1281
    %v1318 = vpack.c.b16 %v1284, %v1282
    %v1319 = vpack.c.b16 %v1287, %v1285
    %v1320 = vpack.c.b16 %v1288, %v1286
    %1353 = vmatprep.subr.bf16.mxu0 %v1290
    %1354 = vmatpush1.bf16.msra.mxu0 %v1289
    %1355 = vmatprep.subr.bf16.mxu0 %v1292
    %1356 = vmatpush1.bf16.msra.mxu0 %v1291
    %1357 = vmatprep.subr.bf16.mxu0 %v1294
    %1358 = vmatpush1.bf16.msra.mxu0 %v1293
    %1359 = vmatprep.subr.bf16.mxu0 %v1296
    %1360 = vmatpush1.bf16.msra.mxu0 %v1295
    %1361 = vmatprep.subr.bf16.mxu0 %v1298
    %1362 = vmatpush1.bf16.msra.mxu0 %v1297
    %1363 = vmatprep.subr.bf16.mxu0 %v1300
    %1364 = vmatpush1.bf16.msra.mxu0 %v1299
    %1365 = vmatprep.subr.bf16.mxu0 %v1302
    %1366 = vmatpush1.bf16.msra.mxu0 %v1301
    %1367 = vmatprep.subr.bf16.mxu0 %v1304
    %1368 = vmatpush1.bf16.msra.mxu0 %v1303
    %1369 = vmatprep.subr.bf16.mxu0 %v1306
    %1370 = vmatpush1.bf16.msra.mxu0 %v1305
    %1371 = vmatprep.subr.bf16.mxu0 %v1308
    %1372 = vmatpush1.bf16.msra.mxu0 %v1307
    %1373 = vmatprep.subr.bf16.mxu0 %v1310
    %1374 = vmatpush1.bf16.msra.mxu0 %v1309
    %1375 = vmatprep.subr.bf16.mxu0 %v1312
    %1376 = vmatpush1.bf16.msra.mxu0 %v1311
    %1377 = vmatprep.subr.bf16.mxu0 %v1314
    %1378 = vmatpush1.bf16.msra.mxu0 %v1313
    %1379 = vmatprep.subr.bf16.mxu0 %v1316
    %1380 = vmatpush1.bf16.msra.mxu0 %v1315
    %1381 = vmatprep.subr.bf16.mxu0 %v1318
    %1382 = vmatpush1.bf16.msra.mxu0 %v1317
    %1383 = vmatprep.subr.bf16.mxu0 %v1320
    %1384 = vmatpush1.bf16.msra.mxu0 %v1319
    %1385 = vmatprep.mubr.bf16.mxu0 %v1146
    %1386 = vmatmul.mubr.bf16.gmra.mrb[0].mxu0 %v1145
    %v1387 = vpop.f32.mrb[0].mxu0
    %v1388 = vadd.f32 %v1186, %v1387
    %v1389 = vpop.f32.mrb[0].mxu0
    %v1390 = vadd.f32 %v1190, %v1389
    %v1391 = vpop.f32.mrb[0].mxu0
    %v1392 = vpop.f32.mrb[0].mxu0
    %1393 = vdwg.mxu0
    %v1394 = vmax.f32 %v1388, 0.0
    %v1395 = vmax.f32 %v1390, 0.0
    %v1396 = vpack.c.bf16 %v1394, %v1394
    %v1397 = vpack.c.bf16 %v1395, %v1395
    %s1398 = scalar_lea.vmem [#allocation6], 1280
    %v1399 = vld [vmem:[%s1398] sm:$0xff]
    %v1400 = vld [vmem:[%s1398 + $0x8] sm:$0xff]
    %v1401 = vld [vmem:[%s1398 + $0x10] sm:$0xff]
    %v1402 = vld [vmem:[%s1398 + $0x18] sm:$0xff]
    %v1403 = vld [vmem:[%s1398 + $0x20] sm:$0xff]
    %v1404 = vld [vmem:[%s1398 + $0x28] sm:$0xff]
    %v1405 = vld [vmem:[%s1398 + $0x30] sm:$0xff]
    %v1406 = vld [vmem:[%s1398 + $0x38] sm:$0xff]
    %v1407 = vld [vmem:[%s1398 + $0x40] sm:$0xff]
    %v1408 = vld [vmem:[%s1398 + $0x48] sm:$0xff]
    %v1409 = vld [vmem:[%s1398 + $0x50] sm:$0xff]
    %v1410 = vld [vmem:[%s1398 + $0x58] sm:$0xff]
    %v1411 = vld [vmem:[%s1398 + $0x60] sm:$0xff]
    %v1412 = vld [vmem:[%s1398 + $0x68] sm:$0xff]
    %v1413 = vld [vmem:[%s1398 + $0x70] sm:$0xff]
    %v1414 = vld [vmem:[%s1398 + $0x78] sm:$0xff]
    %v1415 = vld [vmem:[%s1398 + $0x80] sm:$0xff]
    %v1416 = vld [vmem:[%s1398 + $0x88] sm:$0xff]
    %v1417 = vld [vmem:[%s1398 + $0x90] sm:$0xff]
    %v1418 = vld [vmem:[%s1398 + $0x98] sm:$0xff]
    %v1419 = vld [vmem:[%s1398 + $0xa0] sm:$0xff]
    %v1420 = vld [vmem:[%s1398 + $0xa8] sm:$0xff]
    %v1421 = vld [vmem:[%s1398 + $0xb0] sm:$0xff]
    %v1422 = vld [vmem:[%s1398 + $0xb8] sm:$0xff]
    %v1423 = vld [vmem:[%s1398 + $0xc0] sm:$0xff]
    %v1424 = vld [vmem:[%s1398 + $0xc8] sm:$0xff]
    %v1425 = vld [vmem:[%s1398 + $0xd0] sm:$0xff]
    %v1426 = vld [vmem:[%s1398 + $0xd8] sm:$0xff]
    %v1427 = vld [vmem:[%s1398 + $0xe0] sm:$0xff]
    %v1428 = vld [vmem:[%s1398 + $0xe8] sm:$0xff]
    %v1429 = vld [vmem:[%s1398 + $0xf0] sm:$0xff]
    %v1430 = vld [vmem:[%s1398 + $0xf8] sm:$0xff]
    %s1431 = scalar_lea.vmem %s3, 12
    %v1432 = vld [vmem:[%s1431] sm:$0x3]
    %v1434 = vlaneseq
    %v1435 = vshrl.u32 %v1434, 7
    %v1436 = vsub.s32 0, %v1435
    %v1437 = vrot.slane %v1432, %v1436
    %v1438 = vlaneseq
    %v1439 = vshrl.u32 %v1438, 7
    %v1440 = vsub.s32 1, %v1439
    %v1441 = vrot.slane %v1432, %v1440
    %v1476 = vunpack.c.l.b16 %v1399
    %v1477 = vunpack.c.h.b16 %v1399
    %v1478 = vunpack.c.l.b16 %v1400
    %v1479 = vunpack.c.h.b16 %v1400
    %v1480 = vunpack.c.l.b16 %v1401
    %v1481 = vunpack.c.h.b16 %v1401
    %v1482 = vunpack.c.l.b16 %v1402
    %v1483 = vunpack.c.h.b16 %v1402
    %v1484 = vunpack.c.l.b16 %v1403
    %v1485 = vunpack.c.h.b16 %v1403
    %v1486 = vunpack.c.l.b16 %v1404
    %v1487 = vunpack.c.h.b16 %v1404
    %v1488 = vunpack.c.l.b16 %v1405
    %v1489 = vunpack.c.h.b16 %v1405
    %v1490 = vunpack.c.l.b16 %v1406
    %v1491 = vunpack.c.h.b16 %v1406
    %v1492 = vunpack.c.l.b16 %v1407
    %v1493 = vunpack.c.h.b16 %v1407
    %v1494 = vunpack.c.l.b16 %v1408
    %v1495 = vunpack.c.h.b16 %v1408
    %v1496 = vunpack.c.l.b16 %v1409
    %v1497 = vunpack.c.h.b16 %v1409
    %v1498 = vunpack.c.l.b16 %v1410
    %v1499 = vunpack.c.h.b16 %v1410
    %v1500 = vunpack.c.l.b16 %v1411
    %v1501 = vunpack.c.h.b16 %v1411
    %v1502 = vunpack.c.l.b16 %v1412
    %v1503 = vunpack.c.h.b16 %v1412
    %v1504 = vunpack.c.l.b16 %v1413
    %v1505 = vunpack.c.h.b16 %v1413
    %v1506 = vunpack.c.l.b16 %v1414
    %v1507 = vunpack.c.h.b16 %v1414
    %v1508 = vunpack.c.l.b16 %v1415
    %v1509 = vunpack.c.h.b16 %v1415
    %v1510 = vunpack.c.l.b16 %v1416
    %v1511 = vunpack.c.h.b16 %v1416
    %v1512 = vunpack.c.l.b16 %v1417
    %v1513 = vunpack.c.h.b16 %v1417
    %v1514 = vunpack.c.l.b16 %v1418
    %v1515 = vunpack.c.h.b16 %v1418
    %v1516 = vunpack.c.l.b16 %v1419
    %v1517 = vunpack.c.h.b16 %v1419
    %v1518 = vunpack.c.l.b16 %v1420
    %v1519 = vunpack.c.h.b16 %v1420
    %v1520 = vunpack.c.l.b16 %v1421
    %v1521 = vunpack.c.h.b16 %v1421
    %v1522 = vunpack.c.l.b16 %v1422
    %v1523 = vunpack.c.h.b16 %v1422
    %v1524 = vunpack.c.l.b16 %v1423
    %v1525 = vunpack.c.h.b16 %v1423
    %v1526 = vunpack.c.l.b16 %v1424
    %v1527 = vunpack.c.h.b16 %v1424
    %v1528 = vunpack.c.l.b16 %v1425
    %v1529 = vunpack.c.h.b16 %v1425
    %v1530 = vunpack.c.l.b16 %v1426
    %v1531 = vunpack.c.h.b16 %v1426
    %v1532 = vunpack.c.l.b16 %v1427
    %v1533 = vunpack.c.h.b16 %v1427
    %v1534 = vunpack.c.l.b16 %v1428
    %v1535 = vunpack.c.h.b16 %v1428
    %v1536 = vunpack.c.l.b16 %v1429
    %v1537 = vunpack.c.h.b16 %v1429
    %v1538 = vunpack.c.l.b16 %v1430
    %v1539 = vunpack.c.h.b16 %v1430
    %v1540 = vpack.c.b16 %v1478, %v1476
    %v1541 = vpack.c.b16 %v1479, %v1477
    %v1542 = vpack.c.b16 %v1482, %v1480
    %v1543 = vpack.c.b16 %v1483, %v1481
    %v1544 = vpack.c.b16 %v1486, %v1484
    %v1545 = vpack.c.b16 %v1487, %v1485
    %v1546 = vpack.c.b16 %v1490, %v1488
    %v1547 = vpack.c.b16 %v1491, %v1489
    %v1548 = vpack.c.b16 %v1494, %v1492
    %v1549 = vpack.c.b16 %v1495, %v1493
    %v1550 = vpack.c.b16 %v1498, %v1496
    %v1551 = vpack.c.b16 %v1499, %v1497
    %v1552 = vpack.c.b16 %v1502, %v1500
    %v1553 = vpack.c.b16 %v1503, %v1501
    %v1554 = vpack.c.b16 %v1506, %v1504
    %v1555 = vpack.c.b16 %v1507, %v1505
    %v1556 = vpack.c.b16 %v1510, %v1508
    %v1557 = vpack.c.b16 %v1511, %v1509
    %v1558 = vpack.c.b16 %v1514, %v1512
    %v1559 = vpack.c.b16 %v1515, %v1513
    %v1560 = vpack.c.b16 %v1518, %v1516
    %v1561 = vpack.c.b16 %v1519, %v1517
    %v1562 = vpack.c.b16 %v1522, %v1520
    %v1563 = vpack.c.b16 %v1523, %v1521
    %v1564 = vpack.c.b16 %v1526, %v1524
    %v1565 = vpack.c.b16 %v1527, %v1525
    %v1566 = vpack.c.b16 %v1530, %v1528
    %v1567 = vpack.c.b16 %v1531, %v1529
    %v1568 = vpack.c.b16 %v1534, %v1532
    %v1569 = vpack.c.b16 %v1535, %v1533
    %v1570 = vpack.c.b16 %v1538, %v1536
    %v1571 = vpack.c.b16 %v1539, %v1537
    %1604 = vmatprep.subr.bf16.mxu0 %v1541
    %1605 = vmatpush1.bf16.msra.mxu0 %v1540
    %1606 = vmatprep.subr.bf16.mxu0 %v1543
    %1607 = vmatpush1.bf16.msra.mxu0 %v1542
    %1608 = vmatprep.subr.bf16.mxu0 %v1545
    %1609 = vmatpush1.bf16.msra.mxu0 %v1544
    %1610 = vmatprep.subr.bf16.mxu0 %v1547
    %1611 = vmatpush1.bf16.msra.mxu0 %v1546
    %1612 = vmatprep.subr.bf16.mxu0 %v1549
    %1613 = vmatpush1.bf16.msra.mxu0 %v1548
    %1614 = vmatprep.subr.bf16.mxu0 %v1551
    %1615 = vmatpush1.bf16.msra.mxu0 %v1550
    %1616 = vmatprep.subr.bf16.mxu0 %v1553
    %1617 = vmatpush1.bf16.msra.mxu0 %v1552
    %1618 = vmatprep.subr.bf16.mxu0 %v1555
    %1619 = vmatpush1.bf16.msra.mxu0 %v1554
    %1620 = vmatprep.subr.bf16.mxu0 %v1557
    %1621 = vmatpush1.bf16.msra.mxu0 %v1556
    %1622 = vmatprep.subr.bf16.mxu0 %v1559
    %1623 = vmatpush1.bf16.msra.mxu0 %v1558
    %1624 = vmatprep.subr.bf16.mxu0 %v1561
    %1625 = vmatpush1.bf16.msra.mxu0 %v1560
    %1626 = vmatprep.subr.bf16.mxu0 %v1563
    %1627 = vmatpush1.bf16.msra.mxu0 %v1562
    %1628 = vmatprep.subr.bf16.mxu0 %v1565
    %1629 = vmatpush1.bf16.msra.mxu0 %v1564
    %1630 = vmatprep.subr.bf16.mxu0 %v1567
    %1631 = vmatpush1.bf16.msra.mxu0 %v1566
    %1632 = vmatprep.subr.bf16.mxu0 %v1569
    %1633 = vmatpush1.bf16.msra.mxu0 %v1568
    %1634 = vmatprep.subr.bf16.mxu0 %v1571
    %1635 = vmatpush1.bf16.msra.mxu0 %v1570
    %1636 = vmatprep.mubr.bf16.mxu0 %v1397
    %1637 = vmatmul.mubr.bf16.gmra.mrb[0].mxu0 %v1396
    %v1638 = vpop.f32.mrb[0].mxu0
    %v1639 = vadd.f32 %v1437, %v1638
    %v1640 = vpop.f32.mrb[0].mxu0
    %v1641 = vadd.f32 %v1441, %v1640
    %v1642 = vpop.f32.mrb[0].mxu0
    %v1643 = vpop.f32.mrb[0].mxu0
    %1644 = vdwg.mxu0
    %v1645 = vmax.f32 %v1639, 0.0
    %v1646 = vmax.f32 %v1641, 0.0
    %v1647 = vpack.c.bf16 %v1645, %v1645
    %v1648 = vpack.c.bf16 %v1646, %v1646
    %s1649 = scalar_lea.vmem [#allocation6], 1536
    %v1650 = vld [vmem:[%s1649] sm:$0xff]
    %v1651 = vld [vmem:[%s1649 + $0x8] sm:$0xff]
    %v1652 = vld [vmem:[%s1649 + $0x10] sm:$0xff]
    %v1653 = vld [vmem:[%s1649 + $0x18] sm:$0xff]
    %v1654 = vld [vmem:[%s1649 + $0x20] sm:$0xff]
    %v1655 = vld [vmem:[%s1649 + $0x28] sm:$0xff]
    %v1656 = vld [vmem:[%s1649 + $0x30] sm:$0xff]
    %v1657 = vld [vmem:[%s1649 + $0x38] sm:$0xff]
    %v1658 = vld [vmem:[%s1649 + $0x40] sm:$0xff]
    %v1659 = vld [vmem:[%s1649 + $0x48] sm:$0xff]
    %v1660 = vld [vmem:[%s1649 + $0x50] sm:$0xff]
    %v1661 = vld [vmem:[%s1649 + $0x58] sm:$0xff]
    %v1662 = vld [vmem:[%s1649 + $0x60] sm:$0xff]
    %v1663 = vld [vmem:[%s1649 + $0x68] sm:$0xff]
    %v1664 = vld [vmem:[%s1649 + $0x70] sm:$0xff]
    %v1665 = vld [vmem:[%s1649 + $0x78] sm:$0xff]
    %v1666 = vld [vmem:[%s1649 + $0x80] sm:$0xff]
    %v1667 = vld [vmem:[%s1649 + $0x88] sm:$0xff]
    %v1668 = vld [vmem:[%s1649 + $0x90] sm:$0xff]
    %v1669 = vld [vmem:[%s1649 + $0x98] sm:$0xff]
    %v1670 = vld [vmem:[%s1649 + $0xa0] sm:$0xff]
    %v1671 = vld [vmem:[%s1649 + $0xa8] sm:$0xff]
    %v1672 = vld [vmem:[%s1649 + $0xb0] sm:$0xff]
    %v1673 = vld [vmem:[%s1649 + $0xb8] sm:$0xff]
    %v1674 = vld [vmem:[%s1649 + $0xc0] sm:$0xff]
    %v1675 = vld [vmem:[%s1649 + $0xc8] sm:$0xff]
    %v1676 = vld [vmem:[%s1649 + $0xd0] sm:$0xff]
    %v1677 = vld [vmem:[%s1649 + $0xd8] sm:$0xff]
    %v1678 = vld [vmem:[%s1649 + $0xe0] sm:$0xff]
    %v1679 = vld [vmem:[%s1649 + $0xe8] sm:$0xff]
    %v1680 = vld [vmem:[%s1649 + $0xf0] sm:$0xff]
    %v1681 = vld [vmem:[%s1649 + $0xf8] sm:$0xff]
    %s1682 = scalar_lea.vmem %s3, 14
    %v1683 = vld [vmem:[%s1682] sm:$0x3]
    %v1685 = vlaneseq
    %v1686 = vshrl.u32 %v1685, 7
    %v1687 = vsub.s32 0, %v1686
    %v1688 = vrot.slane %v1683, %v1687
    %v1722 = vunpack.c.l.b16 %v1650
    %v1723 = vunpack.c.h.b16 %v1650
    %v1724 = vunpack.c.l.b16 %v1651
    %v1725 = vunpack.c.h.b16 %v1651
    %v1726 = vunpack.c.l.b16 %v1652
    %v1727 = vunpack.c.h.b16 %v1652
    %v1728 = vunpack.c.l.b16 %v1653
    %v1729 = vunpack.c.h.b16 %v1653
    %v1730 = vunpack.c.l.b16 %v1654
    %v1731 = vunpack.c.h.b16 %v1654
    %v1732 = vunpack.c.l.b16 %v1655
    %v1733 = vunpack.c.h.b16 %v1655
    %v1734 = vunpack.c.l.b16 %v1656
    %v1735 = vunpack.c.h.b16 %v1656
    %v1736 = vunpack.c.l.b16 %v1657
    %v1737 = vunpack.c.h.b16 %v1657
    %v1738 = vunpack.c.l.b16 %v1658
    %v1739 = vunpack.c.h.b16 %v1658
    %v1740 = vunpack.c.l.b16 %v1659
    %v1741 = vunpack.c.h.b16 %v1659
    %v1742 = vunpack.c.l.b16 %v1660
    %v1743 = vunpack.c.h.b16 %v1660
    %v1744 = vunpack.c.l.b16 %v1661
    %v1745 = vunpack.c.h.b16 %v1661
    %v1746 = vunpack.c.l.b16 %v1662
    %v1747 = vunpack.c.h.b16 %v1662
    %v1748 = vunpack.c.l.b16 %v1663
    %v1749 = vunpack.c.h.b16 %v1663
    %v1750 = vunpack.c.l.b16 %v1664
    %v1751 = vunpack.c.h.b16 %v1664
    %v1752 = vunpack.c.l.b16 %v1665
    %v1753 = vunpack.c.h.b16 %v1665
    %v1754 = vunpack.c.l.b16 %v1666
    %v1755 = vunpack.c.h.b16 %v1666
    %v1756 = vunpack.c.l.b16 %v1667
    %v1757 = vunpack.c.h.b16 %v1667
    %v1758 = vunpack.c.l.b16 %v1668
    %v1759 = vunpack.c.h.b16 %v1668
    %v1760 = vunpack.c.l.b16 %v1669
    %v1761 = vunpack.c.h.b16 %v1669
    %v1762 = vunpack.c.l.b16 %v1670
    %v1763 = vunpack.c.h.b16 %v1670
    %v1764 = vunpack.c.l.b16 %v1671
    %v1765 = vunpack.c.h.b16 %v1671
    %v1766 = vunpack.c.l.b16 %v1672
    %v1767 = vunpack.c.h.b16 %v1672
    %v1768 = vunpack.c.l.b16 %v1673
    %v1769 = vunpack.c.h.b16 %v1673
    %v1770 = vunpack.c.l.b16 %v1674
    %v1771 = vunpack.c.h.b16 %v1674
    %v1772 = vunpack.c.l.b16 %v1675
    %v1773 = vunpack.c.h.b16 %v1675
    %v1774 = vunpack.c.l.b16 %v1676
    %v1775 = vunpack.c.h.b16 %v1676
    %v1776 = vunpack.c.l.b16 %v1677
    %v1777 = vunpack.c.h.b16 %v1677
    %v1778 = vunpack.c.l.b16 %v1678
    %v1779 = vunpack.c.h.b16 %v1678
    %v1780 = vunpack.c.l.b16 %v1679
    %v1781 = vunpack.c.h.b16 %v1679
    %v1782 = vunpack.c.l.b16 %v1680
    %v1783 = vunpack.c.h.b16 %v1680
    %v1784 = vunpack.c.l.b16 %v1681
    %v1785 = vunpack.c.h.b16 %v1681
    %v1786 = vpack.c.b16 %v1724, %v1722
    %v1787 = vpack.c.b16 %v1725, %v1723
    %v1788 = vpack.c.b16 %v1728, %v1726
    %v1789 = vpack.c.b16 %v1729, %v1727
    %v1790 = vpack.c.b16 %v1732, %v1730
    %v1791 = vpack.c.b16 %v1733, %v1731
    %v1792 = vpack.c.b16 %v1736, %v1734
    %v1793 = vpack.c.b16 %v1737, %v1735
    %v1794 = vpack.c.b16 %v1740, %v1738
    %v1795 = vpack.c.b16 %v1741, %v1739
    %v1796 = vpack.c.b16 %v1744, %v1742
    %v1797 = vpack.c.b16 %v1745, %v1743
    %v1798 = vpack.c.b16 %v1748, %v1746
    %v1799 = vpack.c.b16 %v1749, %v1747
    %v1800 = vpack.c.b16 %v1752, %v1750
    %v1801 = vpack.c.b16 %v1753, %v1751
    %v1802 = vpack.c.b16 %v1756, %v1754
    %v1803 = vpack.c.b16 %v1757, %v1755
    %v1804 = vpack.c.b16 %v1760, %v1758
    %v1805 = vpack.c.b16 %v1761, %v1759
    %v1806 = vpack.c.b16 %v1764, %v1762
    %v1807 = vpack.c.b16 %v1765, %v1763
    %v1808 = vpack.c.b16 %v1768, %v1766
    %v1809 = vpack.c.b16 %v1769, %v1767
    %v1810 = vpack.c.b16 %v1772, %v1770
    %v1811 = vpack.c.b16 %v1773, %v1771
    %v1812 = vpack.c.b16 %v1776, %v1774
    %v1813 = vpack.c.b16 %v1777, %v1775
    %v1814 = vpack.c.b16 %v1780, %v1778
    %v1815 = vpack.c.b16 %v1781, %v1779
    %v1816 = vpack.c.b16 %v1784, %v1782
    %v1817 = vpack.c.b16 %v1785, %v1783
    %1850 = vmatprep.subr.bf16.mxu0 %v1787
    %1851 = vmatpush1.bf16.msra.mxu0 %v1786
    %1852 = vmatprep.subr.bf16.mxu0 %v1789
    %1853 = vmatpush1.bf16.msra.mxu0 %v1788
    %1854 = vmatprep.subr.bf16.mxu0 %v1791
    %1855 = vmatpush1.bf16.msra.mxu0 %v1790
    %1856 = vmatprep.subr.bf16.mxu0 %v1793
    %1857 = vmatpush1.bf16.msra.mxu0 %v1792
    %1858 = vmatprep.subr.bf16.mxu0 %v1795
    %1859 = vmatpush1.bf16.msra.mxu0 %v1794
    %1860 = vmatprep.subr.bf16.mxu0 %v1797
    %1861 = vmatpush1.bf16.msra.mxu0 %v1796
    %1862 = vmatprep.subr.bf16.mxu0 %v1799
    %1863 = vmatpush1.bf16.msra.mxu0 %v1798
    %1864 = vmatprep.subr.bf16.mxu0 %v1801
    %1865 = vmatpush1.bf16.msra.mxu0 %v1800
    %1866 = vmatprep.subr.bf16.mxu0 %v1803
    %1867 = vmatpush1.bf16.msra.mxu0 %v1802
    %1868 = vmatprep.subr.bf16.mxu0 %v1805
    %1869 = vmatpush1.bf16.msra.mxu0 %v1804
    %1870 = vmatprep.subr.bf16.mxu0 %v1807
    %1871 = vmatpush1.bf16.msra.mxu0 %v1806
    %1872 = vmatprep.subr.bf16.mxu0 %v1809
    %1873 = vmatpush1.bf16.msra.mxu0 %v1808
    %1874 = vmatprep.subr.bf16.mxu0 %v1811
    %1875 = vmatpush1.bf16.msra.mxu0 %v1810
    %1876 = vmatprep.subr.bf16.mxu0 %v1813
    %1877 = vmatpush1.bf16.msra.mxu0 %v1812
    %1878 = vmatprep.subr.bf16.mxu0 %v1815
    %1879 = vmatpush1.bf16.msra.mxu0 %v1814
    %1880 = vmatprep.subr.bf16.mxu0 %v1817
    %1881 = vmatpush1.bf16.msra.mxu0 %v1816
    %1882 = vmatprep.mubr.bf16.mxu0 %v1648
    %1883 = vmatmul.mubr.bf16.gmra.mrb[0].mxu0 %v1647
    %v1884 = vpop.f32.mrb[0].mxu0
    %v1885 = vadd.f32 %v1688, %v1884
    %v1886 = vpop.f32.mrb[0].mxu0
    %v1887 = vpop.f32.mrb[0].mxu0
    %v1888 = vpop.f32.mrb[0].mxu0
    %1889 = vdwg.mxu0
    %v1890 = vxor.u32 %v1885, 2147483648
    %v1891 = vmul.f32 %v1890, 1.442695
    %v1892 = vpow.pop %v1891
    %v1893 = vadd.f32 %v1892, 1.0
    %v1894 = vrcp.pop %v1893
    %v1895 = vmul.f32 1.0, %v1894
    %1896 = vst [vmem:[%s4] sm:$0xff] %v1895
    // Predicated region
    $region30: #{_forward_packed.1} parent=1 // pred_check
      _
    $region31: #{_forward_packed.1} parent=1 // pred_check_branch
      %1898 = sbr.rel (0) target = $region33
    $region32: #{_forward_packed.1} parent=1 // pred_region
      _
    $region33: #{_forward_packed.1} parent=1 // pred_fallthru
      _
    // Predicated region
    $region34: #{_forward_packed.1} parent=1 // pred_check
      _
    $region35: #{_forward_packed.1} parent=1 // pred_check_branch
      %1900 = sbr.rel (0) target = $region37
    $region36: #{_forward_packed.1} parent=1 // pred_region
      _
    $region37: #{_forward_packed.1} parent=1 // pred_fallthru
      _
    %1901 = vsyncpa [#allocation3], 1
    %1902 = vsyncpa [#allocation5], 1

</llo_original>
